<compile_context>
chip_gen: v5e
topology: v5e:2x2
jax: 0.10.0
libtpu: 0.0.40
codegen_flags: <defaults>
</compile_context>

<pallas_src>
import math

import numpy as np

import jax
import jax.numpy as jnp
from jax.experimental import pallas as pl
from jax.experimental.pallas import tpu as pltpu

NC = 3    # nc   (input channels)
NGF = 8   # ngf
NZ = 16   # nz


# --------------------------- fused Pallas kernel ------------------------------

def _make_encoder_kernel(n_pyr):
    """Kernel refs (in order):
       x_flat, W0_dense, [W_i_dense, gamma_i, beta_i, R_i, RT_i] * n_pyr,
       W_heads_dense, b_heads, out."""

    def kernel(*refs):
        x_ref = refs[0]
        w0_ref = refs[1]
        o_ref = refs[-1]

        # input-conv (bias=False) + LeakyReLU(0.2); bf16 operands, f32 accumulate.
        h = jnp.dot(x_ref[...], w0_ref[...], preferred_element_type=jnp.float32)
        h = jnp.where(h >= 0.0, h, 0.2 * h)

        idx = 2
        for _ in range(n_pyr):
            w_ref, g_ref, b_ref, r_ref, rt_ref = refs[idx:idx + 5]
            idx += 5

            # pyramid conv (bias=False)
            y = jnp.dot(h.astype(jnp.bfloat16), w_ref[...],
                        preferred_element_type=jnp.float32)      # (B, S*C) f32

            # BatchNorm2d, training-mode batch statistics (biased var, eps=1e-5).
            # Per-channel reduce / broadcast via constant selector matmuls
            # R (S*C, C) and RT = R.T (C, S*C): no in-kernel reshape/transpose.
            c = g_ref.shape[-1]
            cnt = float(y.shape[0] * (y.shape[1] // c))          # B * S
            ch_sum = jnp.sum(jnp.dot(y, r_ref[...],
                                     preferred_element_type=jnp.float32),
                             axis=0, keepdims=True)              # (1, C)
            mean = ch_sum * (1.0 / cnt)
            cen = y - jnp.dot(mean, rt_ref[...],
                              preferred_element_type=jnp.float32)
            var = jnp.sum(jnp.dot(cen * cen, r_ref[...],
                                  preferred_element_type=jnp.float32),
                          axis=0, keepdims=True) * (1.0 / cnt)   # (1, C)
            scale = g_ref[...] * jax.lax.rsqrt(var + 1e-5)       # (1, C)
            yhat = (cen * jnp.dot(scale, rt_ref[...],
                                  preferred_element_type=jnp.float32)
                    + jnp.dot(b_ref[...], rt_ref[...],
                              preferred_element_type=jnp.float32))
            # LeakyReLU(0.2)
            h = jnp.where(yhat >= 0.0, yhat, 0.2 * yhat)

        # fused conv1/conv2 heads (4x4 valid conv, bias=True), N = 2*nz
        wh_ref, bh_ref = refs[idx], refs[idx + 1]
        o_ref[...] = (jnp.dot(h.astype(jnp.bfloat16), wh_ref[...],
                              preferred_element_type=jnp.float32)
                      + bh_ref[...])

    return kernel


# --------------------- build-time weight lowering (hoisted) -------------------

def _conv_as_dense(w, h_in, stride, pad):
    """Lower Conv2d weight (Cout, Cin, k, k) applied to an (h_in x h_in) NHWC
    image to a dense matrix mapping the NHWC-flattened input row to the
    NHWC-flattened output row.  Returns (dense (HWCin, HoWoCout), h_out)."""
    w = np.asarray(jax.device_get(w), np.float32)
    cout, cin, kh, kw = w.shape
    h_out = (h_in + 2 * pad - kh) // stride + 1
    m = np.zeros((h_in * h_in * cin, h_out * h_out * cout), np.float32)
    for oh in range(h_out):
        for ow in range(h_out):
            c0 = (oh * h_out + ow) * cout
            for i in range(kh):
                hh = oh * stride + i - pad
                if hh < 0 or hh >= h_in:
                    continue
                for j in range(kw):
                    ww = ow * stride + j - pad
                    if ww < 0 or ww >= h_in:
                        continue
                    r0 = (hh * h_in + ww) * cin
                    m[r0:r0 + cin, c0:c0 + cout] += w[:, :, i, j].T
    return m, h_out


def build_forward(params, image_size):
    """Pre-lower all weights once; return a jitted forward(x_nchw) -> [mu, logvar]."""
    n = int(math.log2(image_size))
    assert 2 ** n == image_size and n >= 3
    n_pyr = n - 3

    s = image_size
    w0_d, s = _conv_as_dense(params["w_in"], s, 2, 1)
    consts = [jnp.asarray(w0_d, jnp.bfloat16)]

    for i in range(n_pyr):
        w_d, s_out = _conv_as_dense(params["w_pyr"][i], s, 2, 1)
        cout = params["w_pyr"][i].shape[0]
        sp = s_out * s_out
        r = np.tile(np.eye(cout, dtype=np.float32), (sp, 1))     # (S*C, C)
        consts += [
            jnp.asarray(w_d, jnp.bfloat16),
            params["bn_gamma"][i].reshape(1, cout).astype(jnp.float32),
            params["bn_beta"][i].reshape(1, cout).astype(jnp.float32),
            jnp.asarray(r, jnp.float32),
            jnp.asarray(r.T, jnp.float32),
        ]
        s = s_out

    wh1, s_h = _conv_as_dense(params["w_c1"], s, 1, 0)
    wh2, _ = _conv_as_dense(params["w_c2"], s, 1, 0)
    assert s_h == 1
    wh = np.concatenate([wh1, wh2], axis=1)                      # (S*C_last, 2*nz)
    bh = jnp.concatenate([params["b_c1"], params["b_c2"]]).reshape(1, 2 * NZ)
    consts += [jnp.asarray(wh, jnp.bfloat16), bh.astype(jnp.float32)]

    kernel = _make_encoder_kernel(n_pyr)

    def forward(x_nchw):
        b = x_nchw.shape[0]
        # NCHW -> NHWC flatten only at the public boundary.
        x_flat = jnp.transpose(x_nchw, (0, 2, 3, 1)).reshape(b, -1)
        x_flat = x_flat.astype(jnp.bfloat16)
        args = (x_flat, *consts)
        out = pl.pallas_call(
            kernel,
            out_shape=jax.ShapeDtypeStruct((b, 2 * NZ), jnp.float32),
            grid=(1,),
            in_specs=[pl.BlockSpec(a.shape, lambda i: (0, 0)) for a in args],
            out_specs=pl.BlockSpec((b, 2 * NZ), lambda i: (0, 0)),
            compiler_params=pltpu.CompilerParams(
                dimension_semantics=("arbitrary",)),
        )(*args)
        mu = out[:, :NZ].reshape(b, NZ, 1, 1)
        logvar = out[:, NZ:].reshape(b, NZ, 1, 1)
        return [mu, logvar]

    return jax.jit(forward)


# ------------------------------- params & reference ---------------------------

def init_params(key, image_size):
    n = int(math.log2(image_size))
    assert 2 ** n == image_size and n >= 3
    keys = jax.random.split(key, 5 + (n - 3))
    params = {
        "w_in": 0.05 * jax.random.normal(keys[0], (NGF, NC, 4, 4), jnp.float32),
        "w_pyr": [], "bn_gamma": [], "bn_beta": [],
    }
    for i in range(n - 3):
        cout = NGF * 2 ** (i + 1)
        cin = NGF * 2 ** i
        params["w_pyr"].append(
            0.05 * jax.random.normal(keys[1 + i], (cout, cin, 4, 4), jnp.float32))
        params["bn_gamma"].append(jnp.ones((cout,), jnp.float32))
        params["bn_beta"].append(jnp.zeros((cout,), jnp.float32))
    cin_last = NGF * 2 ** (n - 3)
    params["w_c1"] = 0.05 * jax.random.normal(keys[-4], (NZ, cin_last, 4, 4), jnp.float32)
    params["b_c1"] = 0.01 * jax.random.normal(keys[-3], (NZ,), jnp.float32)
    params["w_c2"] = 0.05 * jax.random.normal(keys[-2], (NZ, cin_last, 4, 4), jnp.float32)
    params["b_c2"] = 0.01 * jax.random.normal(keys[-1], (NZ,), jnp.float32)
    return params


def reference_forward(x, params, image_size):
    """Pure-JAX reference (lax.conv) with the same bf16-operand / f32-accumulate
    precision policy as the kernel, mirroring _Encoder.forward semantics."""
    n = int(math.log2(image_size))

    def conv(a, w, stride, pad):
        return jax.lax.conv_general_dilated(
            a.astype(jnp.bfloat16), w.astype(jnp.bfloat16),
            window_strides=(stride, stride),
            padding=[(pad, pad), (pad, pad)],
            dimension_numbers=("NCHW", "OIHW", "NCHW"),
            preferred_element_type=jnp.float32)

    h = conv(x, params["w_in"], 2, 1)
    h = jnp.where(h >= 0, h, 0.2 * h)
    for i in range(n - 3):
        y = conv(h, params["w_pyr"][i], 2, 1)
        mean = jnp.mean(y, axis=(0, 2, 3), keepdims=True)
        var = jnp.mean((y - mean) ** 2, axis=(0, 2, 3), keepdims=True)
        yhat = ((y - mean) * jax.lax.rsqrt(var + 1e-5)
                * params["bn_gamma"][i].reshape(1, -1, 1, 1)
                + params["bn_beta"][i].reshape(1, -1, 1, 1))
        h = jnp.where(yhat >= 0, yhat, 0.2 * yhat)
    o1 = conv(h, params["w_c1"], 1, 0) + params["b_c1"].reshape(1, -1, 1, 1)
    o2 = conv(h, params["w_c2"], 1, 0) + params["b_c2"].reshape(1, -1, 1, 1)
    return o1, o2


# ------------------------------------ main ------------------------------------

if __name__ == "__main__":
    image_size = 16                      # n = 4 -> one pyramid (conv+BN+LReLU) block
    key = jax.random.PRNGKey(0)
    kx, kp = jax.random.split(key)
    x = jax.random.normal(kx, (2, NC, image_size, image_size), dtype=jnp.float32)
    params = init_params(kp, image_size)

    fwd = build_forward(params, image_size)
    out1, out2 = fwd(x)
    jax.block_until_ready((out1, out2))

    assert out1.shape == (2, NZ, 1, 1), out1.shape
    assert out2.shape == (2, NZ, 1, 1), out2.shape
    assert out1.dtype == jnp.float32 and out2.dtype == jnp.float32

    ref1, ref2 = reference_forward(x, params, image_size)
    np.testing.assert_allclose(np.asarray(out1), np.asarray(ref1), atol=1e-2, rtol=1e-2)
    np.testing.assert_allclose(np.asarray(out2), np.asarray(ref2), atol=1e-2, rtol=1e-2)

    print("KERNEL_OK")
</pallas_src>

<mosaic_0001>
module attributes {stable_mosaic.version = 11 : i64} {
  func.func @kernel(%arg0: i32, %arg1: memref<2x768xbf16, #tpu.memory_space<vmem>>, %arg2: memref<768x512xbf16, #tpu.memory_space<vmem>>, %arg3: memref<512x256xbf16, #tpu.memory_space<vmem>>, %arg4: memref<1x16xf32, #tpu.memory_space<vmem>>, %arg5: memref<1x16xf32, #tpu.memory_space<vmem>>, %arg6: memref<256x16xf32, #tpu.memory_space<vmem>>, %arg7: memref<16x256xf32, #tpu.memory_space<vmem>>, %arg8: memref<256x32xbf16, #tpu.memory_space<vmem>>, %arg9: memref<1x32xf32, #tpu.memory_space<vmem>>, %arg10: memref<2x32xf32, #tpu.memory_space<vmem>>) attributes {dimension_semantics = [#tpu.dimension_semantics<arbitrary>], iteration_bounds = array<i64: 1>, scalar_prefetch = 0 : i64, scratch_operands = 0 : i64, tpu.core_type = #tpu.core_type<tc>, window_params = [{pipeline_mode = #tpu.pipeline_mode<synchronous>, transform_indices = @transform_0, window_bounds = array<i64: 2, 768>}, {pipeline_mode = #tpu.pipeline_mode<synchronous>, transform_indices = @transform_1, window_bounds = array<i64: 768, 512>}, {pipeline_mode = #tpu.pipeline_mode<synchronous>, transform_indices = @transform_2, window_bounds = array<i64: 512, 256>}, {pipeline_mode = #tpu.pipeline_mode<synchronous>, transform_indices = @transform_3, window_bounds = array<i64: 1, 16>}, {pipeline_mode = #tpu.pipeline_mode<synchronous>, transform_indices = @transform_4, window_bounds = array<i64: 1, 16>}, {pipeline_mode = #tpu.pipeline_mode<synchronous>, transform_indices = @transform_5, window_bounds = array<i64: 256, 16>}, {pipeline_mode = #tpu.pipeline_mode<synchronous>, transform_indices = @transform_6, window_bounds = array<i64: 16, 256>}, {pipeline_mode = #tpu.pipeline_mode<synchronous>, transform_indices = @transform_7, window_bounds = array<i64: 256, 32>}, {pipeline_mode = #tpu.pipeline_mode<synchronous>, transform_indices = @transform_8, window_bounds = array<i64: 1, 32>}, {pipeline_mode = #tpu.pipeline_mode<synchronous>, transform_indices = @transform_9, window_bounds = array<i64: 2, 32>}]} {
    %c0 = arith.constant 0 : index
    %c0_0 = arith.constant 0 : index
    %0 = vector.load %arg1[%c0, %c0_0] : memref<2x768xbf16, #tpu.memory_space<vmem>>, vector<2x768xbf16>
    %c0_1 = arith.constant 0 : index
    %c0_2 = arith.constant 0 : index
    %1 = vector.load %arg2[%c0_1, %c0_2] : memref<768x512xbf16, #tpu.memory_space<vmem>>, vector<768x512xbf16>
    %cst = arith.constant dense<0.000000e+00> : vector<2x512xf32>
    %2 = tpu.matmul %0, %1, %cst {dimension_numbers = #tpu.dot_dimension_numbers<[1], [0], [0], [1], [0, 0, 1, 1], [], []>} : vector<2x768xbf16>, vector<768x512xbf16>, vector<2x512xf32> -> vector<2x512xf32>
    %cst_3 = arith.constant 0.000000e+00 : f32
    %3 = vector.broadcast %cst_3 : f32 to vector<2x512xf32>
    %4 = arith.cmpf oge, %2, %3 : vector<2x512xf32>
    %cst_4 = arith.constant 2.000000e-01 : f32
    %5 = vector.broadcast %cst_4 : f32 to vector<2x512xf32>
    %6 = arith.mulf %5, %2 : vector<2x512xf32>
    %7 = arith.select %4, %2, %6 : vector<2x512xi1>, vector<2x512xf32>
    %8 = arith.truncf %7 : vector<2x512xf32> to vector<2x512xbf16>
    %c0_5 = arith.constant 0 : index
    %c0_6 = arith.constant 0 : index
    %9 = vector.load %arg3[%c0_5, %c0_6] : memref<512x256xbf16, #tpu.memory_space<vmem>>, vector<512x256xbf16>
    %cst_7 = arith.constant dense<0.000000e+00> : vector<2x256xf32>
    %10 = tpu.matmul %8, %9, %cst_7 {dimension_numbers = #tpu.dot_dimension_numbers<[1], [0], [0], [1], [0, 0, 1, 1], [], []>} : vector<2x512xbf16>, vector<512x256xbf16>, vector<2x256xf32> -> vector<2x256xf32>
    %c0_8 = arith.constant 0 : index
    %c0_9 = arith.constant 0 : index
    %11 = vector.load %arg6[%c0_8, %c0_9] : memref<256x16xf32, #tpu.memory_space<vmem>>, vector<256x16xf32>
    %cst_10 = arith.constant dense<0.000000e+00> : vector<2x16xf32>
    %12 = tpu.matmul %10, %11, %cst_10 {dimension_numbers = #tpu.dot_dimension_numbers<[1], [0], [0], [1], [0, 0, 1, 1], [], []>} : vector<2x256xf32>, vector<256x16xf32>, vector<2x16xf32> -> vector<2x16xf32>
    %cst_11 = arith.constant dense<0.000000e+00> : vector<16xf32>
    %13 = vector.multi_reduction <add>, %12, %cst_11 [0] : vector<2x16xf32> to vector<16xf32>
    %14 = vector.shape_cast %13 : vector<16xf32> to vector<1x16xf32>
    %cst_12 = arith.constant 3.125000e-02 : f32
    %15 = vector.broadcast %cst_12 : f32 to vector<1x16xf32>
    %16 = arith.mulf %14, %15 : vector<1x16xf32>
    %c0_13 = arith.constant 0 : index
    %c0_14 = arith.constant 0 : index
    %17 = vector.load %arg7[%c0_13, %c0_14] : memref<16x256xf32, #tpu.memory_space<vmem>>, vector<16x256xf32>
    %cst_15 = arith.constant dense<0.000000e+00> : vector<1x256xf32>
    %18 = tpu.matmul %16, %17, %cst_15 {dimension_numbers = #tpu.dot_dimension_numbers<[1], [0], [0], [1], [0, 0, 1, 1], [], []>} : vector<1x16xf32>, vector<16x256xf32>, vector<1x256xf32> -> vector<1x256xf32>
    %19 = vector.broadcast %18 : vector<1x256xf32> to vector<2x256xf32>
    %20 = arith.subf %10, %19 : vector<2x256xf32>
    %21 = arith.mulf %20, %20 : vector<2x256xf32>
    %c0_16 = arith.constant 0 : index
    %c0_17 = arith.constant 0 : index
    %22 = vector.load %arg6[%c0_16, %c0_17] : memref<256x16xf32, #tpu.memory_space<vmem>>, vector<256x16xf32>
    %cst_18 = arith.constant dense<0.000000e+00> : vector<2x16xf32>
    %23 = tpu.matmul %21, %22, %cst_18 {dimension_numbers = #tpu.dot_dimension_numbers<[1], [0], [0], [1], [0, 0, 1, 1], [], []>} : vector<2x256xf32>, vector<256x16xf32>, vector<2x16xf32> -> vector<2x16xf32>
    %cst_19 = arith.constant dense<0.000000e+00> : vector<16xf32>
    %24 = vector.multi_reduction <add>, %23, %cst_19 [0] : vector<2x16xf32> to vector<16xf32>
    %25 = vector.shape_cast %24 : vector<16xf32> to vector<1x16xf32>
    %cst_20 = arith.constant 3.125000e-02 : f32
    %26 = vector.broadcast %cst_20 : f32 to vector<1x16xf32>
    %27 = arith.mulf %25, %26 : vector<1x16xf32>
    %c0_21 = arith.constant 0 : index
    %c0_22 = arith.constant 0 : index
    %28 = vector.load %arg4[%c0_21, %c0_22] : memref<1x16xf32, #tpu.memory_space<vmem>>, vector<1x16xf32>
    %cst_23 = arith.constant 9.99999974E-6 : f32
    %29 = vector.broadcast %cst_23 : f32 to vector<1x16xf32>
    %30 = arith.addf %27, %29 : vector<1x16xf32>
    %31 = math.rsqrt %30 : vector<1x16xf32>
    %32 = arith.mulf %28, %31 : vector<1x16xf32>
    %c0_24 = arith.constant 0 : index
    %c0_25 = arith.constant 0 : index
    %33 = vector.load %arg7[%c0_24, %c0_25] : memref<16x256xf32, #tpu.memory_space<vmem>>, vector<16x256xf32>
    %cst_26 = arith.constant dense<0.000000e+00> : vector<1x256xf32>
    %34 = tpu.matmul %32, %33, %cst_26 {dimension_numbers = #tpu.dot_dimension_numbers<[1], [0], [0], [1], [0, 0, 1, 1], [], []>} : vector<1x16xf32>, vector<16x256xf32>, vector<1x256xf32> -> vector<1x256xf32>
    %35 = vector.broadcast %34 : vector<1x256xf32> to vector<2x256xf32>
    %36 = arith.mulf %20, %35 : vector<2x256xf32>
    %c0_27 = arith.constant 0 : index
    %c0_28 = arith.constant 0 : index
    %37 = vector.load %arg5[%c0_27, %c0_28] : memref<1x16xf32, #tpu.memory_space<vmem>>, vector<1x16xf32>
    %c0_29 = arith.constant 0 : index
    %c0_30 = arith.constant 0 : index
    %38 = vector.load %arg7[%c0_29, %c0_30] : memref<16x256xf32, #tpu.memory_space<vmem>>, vector<16x256xf32>
    %cst_31 = arith.constant dense<0.000000e+00> : vector<1x256xf32>
    %39 = tpu.matmul %37, %38, %cst_31 {dimension_numbers = #tpu.dot_dimension_numbers<[1], [0], [0], [1], [0, 0, 1, 1], [], []>} : vector<1x16xf32>, vector<16x256xf32>, vector<1x256xf32> -> vector<1x256xf32>
    %40 = vector.broadcast %39 : vector<1x256xf32> to vector<2x256xf32>
    %41 = arith.addf %36, %40 : vector<2x256xf32>
    %cst_32 = arith.constant 0.000000e+00 : f32
    %42 = vector.broadcast %cst_32 : f32 to vector<2x256xf32>
    %43 = arith.cmpf oge, %41, %42 : vector<2x256xf32>
    %cst_33 = arith.constant 2.000000e-01 : f32
    %44 = vector.broadcast %cst_33 : f32 to vector<2x256xf32>
    %45 = arith.mulf %44, %41 : vector<2x256xf32>
    %46 = arith.select %43, %41, %45 : vector<2x256xi1>, vector<2x256xf32>
    %47 = arith.truncf %46 : vector<2x256xf32> to vector<2x256xbf16>
    %c0_34 = arith.constant 0 : index
    %c0_35 = arith.constant 0 : index
    %48 = vector.load %arg8[%c0_34, %c0_35] : memref<256x32xbf16, #tpu.memory_space<vmem>>, vector<256x32xbf16>
    %cst_36 = arith.constant dense<0.000000e+00> : vector<2x32xf32>
    %49 = tpu.matmul %47, %48, %cst_36 {dimension_numbers = #tpu.dot_dimension_numbers<[1], [0], [0], [1], [0, 0, 1, 1], [], []>} : vector<2x256xbf16>, vector<256x32xbf16>, vector<2x32xf32> -> vector<2x32xf32>
    %c0_37 = arith.constant 0 : index
    %c0_38 = arith.constant 0 : index
    %50 = vector.load %arg9[%c0_37, %c0_38] : memref<1x32xf32, #tpu.memory_space<vmem>>, vector<1x32xf32>
    %51 = vector.broadcast %50 : vector<1x32xf32> to vector<2x32xf32>
    %52 = arith.addf %49, %51 : vector<2x32xf32>
    %c0_39 = arith.constant 0 : index
    %c0_40 = arith.constant 0 : index
    %53 = vector.load %arg10[%c0_39, %c0_40] : memref<2x32xf32, #tpu.memory_space<vmem>>, vector<2x32xf32>
    tpu.vector_store %arg10[%c0_39, %c0_40], %52 {strides = array<i32>} : memref<2x32xf32, #tpu.memory_space<vmem>>, vector<2x32xf32>,
    return
  }
  func.func @transform_0(%arg0: i32) -> (i32, i32) {
    %c0_i32 = arith.constant 0 : i32
    %c0_i32_0 = arith.constant 0 : i32
    %c0_i32_1 = arith.constant 0 : i32
    return %c0_i32, %c0_i32_0 : i32, i32
  }
  func.func @transform_1(%arg0: i32) -> (i32, i32) {
    %c0_i32 = arith.constant 0 : i32
    %c0_i32_0 = arith.constant 0 : i32
    %c0_i32_1 = arith.constant 0 : i32
    return %c0_i32, %c0_i32_0 : i32, i32
  }
  func.func @transform_2(%arg0: i32) -> (i32, i32) {
    %c0_i32 = arith.constant 0 : i32
    %c0_i32_0 = arith.constant 0 : i32
    %c0_i32_1 = arith.constant 0 : i32
    return %c0_i32, %c0_i32_0 : i32, i32
  }
  func.func @transform_3(%arg0: i32) -> (i32, i32) {
    %c0_i32 = arith.constant 0 : i32
    %c0_i32_0 = arith.constant 0 : i32
    %c0_i32_1 = arith.constant 0 : i32
    return %c0_i32, %c0_i32_0 : i32, i32
  }
  func.func @transform_4(%arg0: i32) -> (i32, i32) {
    %c0_i32 = arith.constant 0 : i32
    %c0_i32_0 = arith.constant 0 : i32
    %c0_i32_1 = arith.constant 0 : i32
    return %c0_i32, %c0_i32_0 : i32, i32
  }
  func.func @transform_5(%arg0: i32) -> (i32, i32) {
    %c0_i32 = arith.constant 0 : i32
    %c0_i32_0 = arith.constant 0 : i32
    %c0_i32_1 = arith.constant 0 : i32
    return %c0_i32, %c0_i32_0 : i32, i32
  }
  func.func @transform_6(%arg0: i32) -> (i32, i32) {
    %c0_i32 = arith.constant 0 : i32
    %c0_i32_0 = arith.constant 0 : i32
    %c0_i32_1 = arith.constant 0 : i32
    return %c0_i32, %c0_i32_0 : i32, i32
  }
  func.func @transform_7(%arg0: i32) -> (i32, i32) {
    %c0_i32 = arith.constant 0 : i32
    %c0_i32_0 = arith.constant 0 : i32
    %c0_i32_1 = arith.constant 0 : i32
    return %c0_i32, %c0_i32_0 : i32, i32
  }
  func.func @transform_8(%arg0: i32) -> (i32, i32) {
    %c0_i32 = arith.constant 0 : i32
    %c0_i32_0 = arith.constant 0 : i32
    %c0_i32_1 = arith.constant 0 : i32
    return %c0_i32, %c0_i32_0 : i32, i32
  }
  func.func @transform_9(%arg0: i32) -> (i32, i32) {
    %c0_i32 = arith.constant 0 : i32
    %c0_i32_0 = arith.constant 0 : i32
    %c0_i32_1 = arith.constant 0 : i32
    return %c0_i32, %c0_i32_0 : i32, i32
  }
}

</mosaic_0001>

<llo_original>
// kernel: forward.1
$region0: #{forward.1}
  #allocation0 [shape = 'u32[]', space=smem, size = 0x4, offset = 0x4, fixed_abs, tag = 'smem constant byte address 0x4 - core index']
  #allocation1 [shape = 'u32[72,128]{1,0:T(1,128)}', space=vmem, size = 0x9000, scoped, tag = 'internal scratch']
  %s0 = inlined_call_operand.vmem [shape: bf16[2,768], index: 0, kind: input, shape index: {}]
  %s1 = inlined_call_operand.hbm [shape: bf16[768,512], index: 1, kind: input, shape index: {}]
  %s2 = inlined_call_operand.vmem [shape: bf16[512,256], index: 2, kind: input, shape index: {}]
  %s3 = inlined_call_operand.vmem [shape: f32[1,16], index: 3, kind: input, shape index: {}]
  %s4 = inlined_call_operand.vmem [shape: f32[1,16], index: 4, kind: input, shape index: {}]
  %s5 = inlined_call_operand.hbm [shape: f32[256,16], index: 5, kind: input, shape index: {}]
  %s6 = inlined_call_operand.vmem [shape: f32[16,256], index: 6, kind: input, shape index: {}]
  %s7 = inlined_call_operand.vmem [shape: bf16[256,32], index: 7, kind: input, shape index: {}]
  %s8 = inlined_call_operand.vmem [shape: f32[1,32], index: 8, kind: input, shape index: {}]
  %s9 = inlined_call_operand.vmem [shape: f32[2,32], index: 9, kind: output, shape index: {}]
  %s10 = sld [smem:[#allocation0]]
  $region54: #{forward.1} parent=0
    _
  %s12 = ssub.s32 1, %s10
  %s13 = scalar_select 0, %s12, %s10
  $region1: #{forward.1} parent=0
    #allocation2 [shape = 'u8[786432]{0}', space=vmem, size = 0xc0000, scoped, tag = 'input window, operand 1, single buffered']
    #allocation3 [shape = 's32[1]{0}', space=sflag, size = 0x4, scoped, tag = 'scoped memory for forward.1']
    #allocation4 [shape = 'u8[131072]{0}', space=vmem, size = 0x20000, scoped, tag = 'input window, operand 5, single buffered']
    #allocation5 [shape = 's32[1]{0}', space=sflag, size = 0x4, scoped, tag = 'scoped memory for forward.1']
    %14 = vsyncpa [#allocation3], 0
    %15 = vsyncpa [#allocation5], 0
    // Predicated region
    $region2: #{forward.1} parent=1 // pred_check
      _
    $region3: #{forward.1} parent=1 // pred_check_branch
      %17 = sbr.rel (0) target = $region5
    $region4: #{forward.1} parent=1 // pred_region
      _
    $region5: #{forward.1} parent=1 // pred_fallthru
      _
    // Predicated region
    $region6: #{forward.1} parent=1 // pred_check
      _
    $region7: #{forward.1} parent=1 // pred_check_branch
      %19 = sbr.rel (0) target = $region9
    $region8: #{forward.1} parent=1 // pred_region
      %21 = vsyncadd [#allocation3], 0
      %s22 = sshll.u32 %s1, 4
      %s23 = int_to_ptr.hbm [resolvable:$true] %s22
      %s24 = sshll.u32 [#allocation2], 4
      %s25 = int_to_ptr.vmem [resolvable:$true] %s24
      %30 = dma.hbm_to_vmem [thread:$0]  %s23, 24576, %s25, [#allocation3], 256, 256, 16
    $region9: #{forward.1} parent=1 // pred_fallthru
      _
    // Predicated region
    $region10: #{forward.1} parent=1 // pred_check
      _
    $region11: #{forward.1} parent=1 // pred_check_branch
      %32 = sbr.rel (0) target = $region13
    $region12: #{forward.1} parent=1 // pred_region
      _
    $region13: #{forward.1} parent=1 // pred_fallthru
      _
    // Predicated region
    $region14: #{forward.1} parent=1 // pred_check
      _
    $region15: #{forward.1} parent=1 // pred_check_branch
      %34 = sbr.rel (0) target = $region17
    $region16: #{forward.1} parent=1 // pred_region
      _
    $region17: #{forward.1} parent=1 // pred_fallthru
      _
    // Predicated region
    $region18: #{forward.1} parent=1 // pred_check
      _
    $region19: #{forward.1} parent=1 // pred_check_branch
      %36 = sbr.rel (0) target = $region21
    $region20: #{forward.1} parent=1 // pred_region
      _
    $region21: #{forward.1} parent=1 // pred_fallthru
      _
    // Predicated region
    $region22: #{forward.1} parent=1 // pred_check
      _
    $region23: #{forward.1} parent=1 // pred_check_branch
      %38 = sbr.rel (0) target = $region25
    $region24: #{forward.1} parent=1 // pred_region
      %40 = vsyncadd [#allocation5], 0
      %s41 = sshll.u32 %s5, 4
      %s42 = int_to_ptr.hbm [resolvable:$true] %s41
      %s43 = sshll.u32 [#allocation4], 4
      %s44 = int_to_ptr.vmem [resolvable:$true] %s43
      %49 = dma.hbm_to_vmem [thread:$0]  %s42, 4096, %s44, [#allocation5], 128, 128, 8
    $region25: #{forward.1} parent=1 // pred_fallthru
      _
    // Predicated region
    $region26: #{forward.1} parent=1 // pred_check
      _
    $region27: #{forward.1} parent=1 // pred_check_branch
      %51 = sbr.rel (0) target = $region29
    $region28: #{forward.1} parent=1 // pred_region
      _
    $region29: #{forward.1} parent=1 // pred_fallthru
      _
    // Predicated region
    $region30: #{forward.1} parent=1 // pred_check
      _
    $region31: #{forward.1} parent=1 // pred_check_branch
      %53 = sbr.rel (0) target = $region33
    $region32: #{forward.1} parent=1 // pred_region
      _
    $region33: #{forward.1} parent=1 // pred_fallthru
      _
    // Predicated region
    $region34: #{forward.1} parent=1 // pred_check
      _
    $region35: #{forward.1} parent=1 // pred_check_branch
      %55 = sbr.rel (0) target = $region37
    $region36: #{forward.1} parent=1 // pred_region
      _
    $region37: #{forward.1} parent=1 // pred_fallthru
      _
    // Predicated region
    $region38: #{forward.1} parent=1 // pred_check
      _
    $region39: #{forward.1} parent=1 // pred_check_branch
      %57 = sbr.rel (0) target = $region41
    $region40: #{forward.1} parent=1 // pred_region
      %59 = dma.done [#allocation3], 24576
    $region41: #{forward.1} parent=1 // pred_fallthru
      _
    // Predicated region
    $region42: #{forward.1} parent=1 // pred_check
      _
    $region43: #{forward.1} parent=1 // pred_check_branch
      %61 = sbr.rel (0) target = $region45
    $region44: #{forward.1} parent=1 // pred_region
      %63 = dma.done [#allocation5], 4096
    $region45: #{forward.1} parent=1 // pred_fallthru
      _
    %v64 = vld [vmem:[%s0] sm:$0x3f]
    %v65 = vld [vmem:[#allocation2] sm:$0xff]
    %v66 = vld [vmem:[#allocation2 + $0x8] sm:$0xff]
    %v67 = vld [vmem:[#allocation2 + $0x10] sm:$0xff]
    %v68 = vld [vmem:[#allocation2 + $0x18] sm:$0xff]
    %v69 = vld [vmem:[#allocation2 + $0x20] sm:$0xff]
    %v70 = vld [vmem:[#allocation2 + $0x28] sm:$0xff]
    %v71 = vld [vmem:[#allocation2 + $0x30] sm:$0xff]
    %v72 = vld [vmem:[#allocation2 + $0x38] sm:$0xff]
    %v73 = vld [vmem:[#allocation2 + $0x40] sm:$0xff]
    %v74 = vld [vmem:[#allocation2 + $0x48] sm:$0xff]
    %v75 = vld [vmem:[#allocation2 + $0x50] sm:$0xff]
    %v76 = vld [vmem:[#allocation2 + $0x58] sm:$0xff]
    %v77 = vld [vmem:[#allocation2 + $0x60] sm:$0xff]
    %v78 = vld [vmem:[#allocation2 + $0x68] sm:$0xff]
    %v79 = vld [vmem:[#allocation2 + $0x70] sm:$0xff]
    %v80 = vld [vmem:[#allocation2 + $0x78] sm:$0xff]
    %v81 = vld [vmem:[#allocation2 + $0x80] sm:$0xff]
    %v82 = vld [vmem:[#allocation2 + $0x88] sm:$0xff]
    %v83 = vld [vmem:[#allocation2 + $0x90] sm:$0xff]
    %v84 = vld [vmem:[#allocation2 + $0x98] sm:$0xff]
    %v85 = vld [vmem:[#allocation2 + $0xa0] sm:$0xff]
    %v86 = vld [vmem:[#allocation2 + $0xa8] sm:$0xff]
    %v87 = vld [vmem:[#allocation2 + $0xb0] sm:$0xff]
    %v88 = vld [vmem:[#allocation2 + $0xb8] sm:$0xff]
    %v89 = vld [vmem:[#allocation2 + $0xc0] sm:$0xff]
    %v90 = vld [vmem:[#allocation2 + $0xc8] sm:$0xff]
    %v91 = vld [vmem:[#allocation2 + $0xd0] sm:$0xff]
    %v92 = vld [vmem:[#allocation2 + $0xd8] sm:$0xff]
    %v93 = vld [vmem:[#allocation2 + $0xe0] sm:$0xff]
    %v94 = vld [vmem:[#allocation2 + $0xe8] sm:$0xff]
    %v95 = vld [vmem:[#allocation2 + $0xf0] sm:$0xff]
    %v96 = vld [vmem:[#allocation2 + $0xf8] sm:$0xff]
    %v97 = vld [vmem:[#allocation2 + $0x100] sm:$0xff]
    %v98 = vld [vmem:[#allocation2 + $0x108] sm:$0xff]
    %v99 = vld [vmem:[#allocation2 + $0x110] sm:$0xff]
    %v100 = vld [vmem:[#allocation2 + $0x118] sm:$0xff]
    %v101 = vld [vmem:[#allocation2 + $0x120] sm:$0xff]
    %v102 = vld [vmem:[#allocation2 + $0x128] sm:$0xff]
    %v103 = vld [vmem:[#allocation2 + $0x130] sm:$0xff]
    %v104 = vld [vmem:[#allocation2 + $0x138] sm:$0xff]
    %v105 = vld [vmem:[#allocation2 + $0x140] sm:$0xff]
    %v106 = vld [vmem:[#allocation2 + $0x148] sm:$0xff]
    %v107 = vld [vmem:[#allocation2 + $0x150] sm:$0xff]
    %v108 = vld [vmem:[#allocation2 + $0x158] sm:$0xff]
    %v109 = vld [vmem:[#allocation2 + $0x160] sm:$0xff]
    %v110 = vld [vmem:[#allocation2 + $0x168] sm:$0xff]
    %v111 = vld [vmem:[#allocation2 + $0x170] sm:$0xff]
    %v112 = vld [vmem:[#allocation2 + $0x178] sm:$0xff]
    %v113 = vld [vmem:[#allocation2 + $0x180] sm:$0xff]
    %v114 = vld [vmem:[#allocation2 + $0x188] sm:$0xff]
    %v115 = vld [vmem:[#allocation2 + $0x190] sm:$0xff]
    %v116 = vld [vmem:[#allocation2 + $0x198] sm:$0xff]
    %v117 = vld [vmem:[#allocation2 + $0x1a0] sm:$0xff]
    %v118 = vld [vmem:[#allocation2 + $0x1a8] sm:$0xff]
    %v119 = vld [vmem:[#allocation2 + $0x1b0] sm:$0xff]
    %v120 = vld [vmem:[#allocation2 + $0x1b8] sm:$0xff]
    %v121 = vld [vmem:[#allocation2 + $0x1c0] sm:$0xff]
    %v122 = vld [vmem:[#allocation2 + $0x1c8] sm:$0xff]
    %v123 = vld [vmem:[#allocation2 + $0x1d0] sm:$0xff]
    %v124 = vld [vmem:[#allocation2 + $0x1d8] sm:$0xff]
    %v125 = vld [vmem:[#allocation2 + $0x1e0] sm:$0xff]
    %v126 = vld [vmem:[#allocation2 + $0x1e8] sm:$0xff]
    %v127 = vld [vmem:[#allocation2 + $0x1f0] sm:$0xff]
    %v128 = vld [vmem:[#allocation2 + $0x1f8] sm:$0xff]
    %v129 = vld [vmem:[#allocation2 + $0x200] sm:$0xff]
    %v130 = vld [vmem:[#allocation2 + $0x208] sm:$0xff]
    %v131 = vld [vmem:[#allocation2 + $0x210] sm:$0xff]
    %v132 = vld [vmem:[#allocation2 + $0x218] sm:$0xff]
    %v133 = vld [vmem:[#allocation2 + $0x220] sm:$0xff]
    %v134 = vld [vmem:[#allocation2 + $0x228] sm:$0xff]
    %v135 = vld [vmem:[#allocation2 + $0x230] sm:$0xff]
    %v136 = vld [vmem:[#allocation2 + $0x238] sm:$0xff]
    %v137 = vld [vmem:[#allocation2 + $0x240] sm:$0xff]
    %v138 = vld [vmem:[#allocation2 + $0x248] sm:$0xff]
    %v139 = vld [vmem:[#allocation2 + $0x250] sm:$0xff]
    %v140 = vld [vmem:[#allocation2 + $0x258] sm:$0xff]
    %v141 = vld [vmem:[#allocation2 + $0x260] sm:$0xff]
    %v142 = vld [vmem:[#allocation2 + $0x268] sm:$0xff]
    %v143 = vld [vmem:[#allocation2 + $0x270] sm:$0xff]
    %v144 = vld [vmem:[#allocation2 + $0x278] sm:$0xff]
    %v145 = vld [vmem:[#allocation2 + $0x280] sm:$0xff]
    %v146 = vld [vmem:[#allocation2 + $0x288] sm:$0xff]
    %v147 = vld [vmem:[#allocation2 + $0x290] sm:$0xff]
    %v148 = vld [vmem:[#allocation2 + $0x298] sm:$0xff]
    %v149 = vld [vmem:[#allocation2 + $0x2a0] sm:$0xff]
    %v150 = vld [vmem:[#allocation2 + $0x2a8] sm:$0xff]
    %v151 = vld [vmem:[#allocation2 + $0x2b0] sm:$0xff]
    %v152 = vld [vmem:[#allocation2 + $0x2b8] sm:$0xff]
    %v153 = vld [vmem:[#allocation2 + $0x2c0] sm:$0xff]
    %v154 = vld [vmem:[#allocation2 + $0x2c8] sm:$0xff]
    %v155 = vld [vmem:[#allocation2 + $0x2d0] sm:$0xff]
    %v156 = vld [vmem:[#allocation2 + $0x2d8] sm:$0xff]
    %v157 = vld [vmem:[#allocation2 + $0x2e0] sm:$0xff]
    %v158 = vld [vmem:[#allocation2 + $0x2e8] sm:$0xff]
    %v159 = vld [vmem:[#allocation2 + $0x2f0] sm:$0xff]
    %v160 = vld [vmem:[#allocation2 + $0x2f8] sm:$0xff]
    %v161 = vld [vmem:[#allocation2 + $0x300] sm:$0xff]
    %v162 = vld [vmem:[#allocation2 + $0x308] sm:$0xff]
    %v163 = vld [vmem:[#allocation2 + $0x310] sm:$0xff]
    %v164 = vld [vmem:[#allocation2 + $0x318] sm:$0xff]
    %v165 = vld [vmem:[#allocation2 + $0x320] sm:$0xff]
    %v166 = vld [vmem:[#allocation2 + $0x328] sm:$0xff]
    %v167 = vld [vmem:[#allocation2 + $0x330] sm:$0xff]
    %v168 = vld [vmem:[#allocation2 + $0x338] sm:$0xff]
    %v169 = vld [vmem:[#allocation2 + $0x340] sm:$0xff]
    %v170 = vld [vmem:[#allocation2 + $0x348] sm:$0xff]
    %v171 = vld [vmem:[#allocation2 + $0x350] sm:$0xff]
    %v172 = vld [vmem:[#allocation2 + $0x358] sm:$0xff]
    %v173 = vld [vmem:[#allocation2 + $0x360] sm:$0xff]
    %v174 = vld [vmem:[#allocation2 + $0x368] sm:$0xff]
    %v175 = vld [vmem:[#allocation2 + $0x370] sm:$0xff]
    %v176 = vld [vmem:[#allocation2 + $0x378] sm:$0xff]
    %v177 = vld [vmem:[#allocation2 + $0x380] sm:$0xff]
    %v178 = vld [vmem:[#allocation2 + $0x388] sm:$0xff]
    %v179 = vld [vmem:[#allocation2 + $0x390] sm:$0xff]
    %v180 = vld [vmem:[#allocation2 + $0x398] sm:$0xff]
    %v181 = vld [vmem:[#allocation2 + $0x3a0] sm:$0xff]
    %v182 = vld [vmem:[#allocation2 + $0x3a8] sm:$0xff]
    %v183 = vld [vmem:[#allocation2 + $0x3b0] sm:$0xff]
    %v184 = vld [vmem:[#allocation2 + $0x3b8] sm:$0xff]
    %v185 = vld [vmem:[#allocation2 + $0x3c0] sm:$0xff]
    %v186 = vld [vmem:[#allocation2 + $0x3c8] sm:$0xff]
    %v187 = vld [vmem:[#allocation2 + $0x3d0] sm:$0xff]
    %v188 = vld [vmem:[#allocation2 + $0x3d8] sm:$0xff]
    %v189 = vld [vmem:[#allocation2 + $0x3e0] sm:$0xff]
    %v190 = vld [vmem:[#allocation2 + $0x3e8] sm:$0xff]
    %v191 = vld [vmem:[#allocation2 + $0x3f0] sm:$0xff]
    %v192 = vld [vmem:[#allocation2 + $0x3f8] sm:$0xff]
    %v193 = vld [vmem:[#allocation2 + $0x400] sm:$0xff]
    %v194 = vld [vmem:[#allocation2 + $0x408] sm:$0xff]
    %v195 = vld [vmem:[#allocation2 + $0x410] sm:$0xff]
    %v196 = vld [vmem:[#allocation2 + $0x418] sm:$0xff]
    %v197 = vld [vmem:[#allocation2 + $0x420] sm:$0xff]
    %v198 = vld [vmem:[#allocation2 + $0x428] sm:$0xff]
    %v199 = vld [vmem:[#allocation2 + $0x430] sm:$0xff]
    %v200 = vld [vmem:[#allocation2 + $0x438] sm:$0xff]
    %v201 = vld [vmem:[#allocation2 + $0x440] sm:$0xff]
    %v202 = vld [vmem:[#allocation2 + $0x448] sm:$0xff]
    %v203 = vld [vmem:[#allocation2 + $0x450] sm:$0xff]
    %v204 = vld [vmem:[#allocation2 + $0x458] sm:$0xff]
    %v205 = vld [vmem:[#allocation2 + $0x460] sm:$0xff]
    %v206 = vld [vmem:[#allocation2 + $0x468] sm:$0xff]
    %v207 = vld [vmem:[#allocation2 + $0x470] sm:$0xff]
    %v208 = vld [vmem:[#allocation2 + $0x478] sm:$0xff]
    %v209 = vld [vmem:[#allocation2 + $0x480] sm:$0xff]
    %v210 = vld [vmem:[#allocation2 + $0x488] sm:$0xff]
    %v211 = vld [vmem:[#allocation2 + $0x490] sm:$0xff]
    %v212 = vld [vmem:[#allocation2 + $0x498] sm:$0xff]
    %v213 = vld [vmem:[#allocation2 + $0x4a0] sm:$0xff]
    %v214 = vld [vmem:[#allocation2 + $0x4a8] sm:$0xff]
    %v215 = vld [vmem:[#allocation2 + $0x4b0] sm:$0xff]
    %v216 = vld [vmem:[#allocation2 + $0x4b8] sm:$0xff]
    %v217 = vld [vmem:[#allocation2 + $0x4c0] sm:$0xff]
    %v218 = vld [vmem:[#allocation2 + $0x4c8] sm:$0xff]
    %v219 = vld [vmem:[#allocation2 + $0x4d0] sm:$0xff]
    %v220 = vld [vmem:[#allocation2 + $0x4d8] sm:$0xff]
    %v221 = vld [vmem:[#allocation2 + $0x4e0] sm:$0xff]
    %v222 = vld [vmem:[#allocation2 + $0x4e8] sm:$0xff]
    %v223 = vld [vmem:[#allocation2 + $0x4f0] sm:$0xff]
    %v224 = vld [vmem:[#allocation2 + $0x4f8] sm:$0xff]
    %v225 = vld [vmem:[#allocation2 + $0x500] sm:$0xff]
    %v226 = vld [vmem:[#allocation2 + $0x508] sm:$0xff]
    %v227 = vld [vmem:[#allocation2 + $0x510] sm:$0xff]
    %v228 = vld [vmem:[#allocation2 + $0x518] sm:$0xff]
    %v229 = vld [vmem:[#allocation2 + $0x520] sm:$0xff]
    %v230 = vld [vmem:[#allocation2 + $0x528] sm:$0xff]
    %v231 = vld [vmem:[#allocation2 + $0x530] sm:$0xff]
    %v232 = vld [vmem:[#allocation2 + $0x538] sm:$0xff]
    %v233 = vld [vmem:[#allocation2 + $0x540] sm:$0xff]
    %v234 = vld [vmem:[#allocation2 + $0x548] sm:$0xff]
    %v235 = vld [vmem:[#allocation2 + $0x550] sm:$0xff]
    %v236 = vld [vmem:[#allocation2 + $0x558] sm:$0xff]
    %v237 = vld [vmem:[#allocation2 + $0x560] sm:$0xff]
    %v238 = vld [vmem:[#allocation2 + $0x568] sm:$0xff]
    %v239 = vld [vmem:[#allocation2 + $0x570] sm:$0xff]
    %v240 = vld [vmem:[#allocation2 + $0x578] sm:$0xff]
    %v241 = vld [vmem:[#allocation2 + $0x580] sm:$0xff]
    %v242 = vld [vmem:[#allocation2 + $0x588] sm:$0xff]
    %v243 = vld [vmem:[#allocation2 + $0x590] sm:$0xff]
    %v244 = vld [vmem:[#allocation2 + $0x598] sm:$0xff]
    %v245 = vld [vmem:[#allocation2 + $0x5a0] sm:$0xff]
    %v246 = vld [vmem:[#allocation2 + $0x5a8] sm:$0xff]
    %v247 = vld [vmem:[#allocation2 + $0x5b0] sm:$0xff]
    %v248 = vld [vmem:[#allocation2 + $0x5b8] sm:$0xff]
    %v249 = vld [vmem:[#allocation2 + $0x5c0] sm:$0xff]
    %v250 = vld [vmem:[#allocation2 + $0x5c8] sm:$0xff]
    %v251 = vld [vmem:[#allocation2 + $0x5d0] sm:$0xff]
    %v252 = vld [vmem:[#allocation2 + $0x5d8] sm:$0xff]
    %v253 = vld [vmem:[#allocation2 + $0x5e0] sm:$0xff]
    %v254 = vld [vmem:[#allocation2 + $0x5e8] sm:$0xff]
    %v255 = vld [vmem:[#allocation2 + $0x5f0] sm:$0xff]
    %v256 = vld [vmem:[#allocation2 + $0x5f8] sm:$0xff]
    %258 = vst [vmem:[#allocation1] ss:$9 sm:$0xff] %v64
    %v259 = vld [vmem:[#allocation1] sm:$0xff]
    %v260 = vld [vmem:[#allocation1 + $0x9] sm:$0xff]
    %v261 = vld [vmem:[#allocation1 + $0x12] sm:$0xff]
    %v262 = vld [vmem:[#allocation1 + $0x1b] sm:$0xff]
    %v263 = vld [vmem:[#allocation1 + $0x24] sm:$0xff]
    %v264 = vld [vmem:[#allocation1 + $0x2d] sm:$0xff]
    %v463 = vunpack.c.l.b16 %v65
    %v464 = vunpack.c.h.b16 %v65
    %v465 = vunpack.c.l.b16 %v66
    %v466 = vunpack.c.h.b16 %v66
    %v467 = vunpack.c.l.b16 %v67
    %v468 = vunpack.c.h.b16 %v67
    %v469 = vunpack.c.l.b16 %v68
    %v470 = vunpack.c.h.b16 %v68
    %v471 = vunpack.c.l.b16 %v69
    %v472 = vunpack.c.h.b16 %v69
    %v473 = vunpack.c.l.b16 %v70
    %v474 = vunpack.c.h.b16 %v70
    %v475 = vunpack.c.l.b16 %v71
    %v476 = vunpack.c.h.b16 %v71
    %v477 = vunpack.c.l.b16 %v72
    %v478 = vunpack.c.h.b16 %v72
    %v479 = vunpack.c.l.b16 %v73
    %v480 = vunpack.c.h.b16 %v73
    %v481 = vunpack.c.l.b16 %v74
    %v482 = vunpack.c.h.b16 %v74
    %v483 = vunpack.c.l.b16 %v75
    %v484 = vunpack.c.h.b16 %v75
    %v485 = vunpack.c.l.b16 %v76
    %v486 = vunpack.c.h.b16 %v76
    %v487 = vunpack.c.l.b16 %v77
    %v488 = vunpack.c.h.b16 %v77
    %v489 = vunpack.c.l.b16 %v78
    %v490 = vunpack.c.h.b16 %v78
    %v491 = vunpack.c.l.b16 %v79
    %v492 = vunpack.c.h.b16 %v79
    %v493 = vunpack.c.l.b16 %v80
    %v494 = vunpack.c.h.b16 %v80
    %v495 = vunpack.c.l.b16 %v81
    %v496 = vunpack.c.h.b16 %v81
    %v497 = vunpack.c.l.b16 %v82
    %v498 = vunpack.c.h.b16 %v82
    %v499 = vunpack.c.l.b16 %v83
    %v500 = vunpack.c.h.b16 %v83
    %v501 = vunpack.c.l.b16 %v84
    %v502 = vunpack.c.h.b16 %v84
    %v503 = vunpack.c.l.b16 %v85
    %v504 = vunpack.c.h.b16 %v85
    %v505 = vunpack.c.l.b16 %v86
    %v506 = vunpack.c.h.b16 %v86
    %v507 = vunpack.c.l.b16 %v87
    %v508 = vunpack.c.h.b16 %v87
    %v509 = vunpack.c.l.b16 %v88
    %v510 = vunpack.c.h.b16 %v88
    %v511 = vunpack.c.l.b16 %v89
    %v512 = vunpack.c.h.b16 %v89
    %v513 = vunpack.c.l.b16 %v90
    %v514 = vunpack.c.h.b16 %v90
    %v515 = vunpack.c.l.b16 %v91
    %v516 = vunpack.c.h.b16 %v91
    %v517 = vunpack.c.l.b16 %v92
    %v518 = vunpack.c.h.b16 %v92
    %v519 = vunpack.c.l.b16 %v93
    %v520 = vunpack.c.h.b16 %v93
    %v521 = vunpack.c.l.b16 %v94
    %v522 = vunpack.c.h.b16 %v94
    %v523 = vunpack.c.l.b16 %v95
    %v524 = vunpack.c.h.b16 %v95
    %v525 = vunpack.c.l.b16 %v96
    %v526 = vunpack.c.h.b16 %v96
    %v527 = vunpack.c.l.b16 %v97
    %v528 = vunpack.c.h.b16 %v97
    %v529 = vunpack.c.l.b16 %v98
    %v530 = vunpack.c.h.b16 %v98
    %v531 = vunpack.c.l.b16 %v99
    %v532 = vunpack.c.h.b16 %v99
    %v533 = vunpack.c.l.b16 %v100
    %v534 = vunpack.c.h.b16 %v100
    %v535 = vunpack.c.l.b16 %v101
    %v536 = vunpack.c.h.b16 %v101
    %v537 = vunpack.c.l.b16 %v102
    %v538 = vunpack.c.h.b16 %v102
    %v539 = vunpack.c.l.b16 %v103
    %v540 = vunpack.c.h.b16 %v103
    %v541 = vunpack.c.l.b16 %v104
    %v542 = vunpack.c.h.b16 %v104
    %v543 = vunpack.c.l.b16 %v105
    %v544 = vunpack.c.h.b16 %v105
    %v545 = vunpack.c.l.b16 %v106
    %v546 = vunpack.c.h.b16 %v106
    %v547 = vunpack.c.l.b16 %v107
    %v548 = vunpack.c.h.b16 %v107
    %v549 = vunpack.c.l.b16 %v108
    %v550 = vunpack.c.h.b16 %v108
    %v551 = vunpack.c.l.b16 %v109
    %v552 = vunpack.c.h.b16 %v109
    %v553 = vunpack.c.l.b16 %v110
    %v554 = vunpack.c.h.b16 %v110
    %v555 = vunpack.c.l.b16 %v111
    %v556 = vunpack.c.h.b16 %v111
    %v557 = vunpack.c.l.b16 %v112
    %v558 = vunpack.c.h.b16 %v112
    %v559 = vunpack.c.l.b16 %v113
    %v560 = vunpack.c.h.b16 %v113
    %v561 = vunpack.c.l.b16 %v114
    %v562 = vunpack.c.h.b16 %v114
    %v563 = vunpack.c.l.b16 %v115
    %v564 = vunpack.c.h.b16 %v115
    %v565 = vunpack.c.l.b16 %v116
    %v566 = vunpack.c.h.b16 %v116
    %v567 = vunpack.c.l.b16 %v117
    %v568 = vunpack.c.h.b16 %v117
    %v569 = vunpack.c.l.b16 %v118
    %v570 = vunpack.c.h.b16 %v118
    %v571 = vunpack.c.l.b16 %v119
    %v572 = vunpack.c.h.b16 %v119
    %v573 = vunpack.c.l.b16 %v120
    %v574 = vunpack.c.h.b16 %v120
    %v575 = vunpack.c.l.b16 %v121
    %v576 = vunpack.c.h.b16 %v121
    %v577 = vunpack.c.l.b16 %v122
    %v578 = vunpack.c.h.b16 %v122
    %v579 = vunpack.c.l.b16 %v123
    %v580 = vunpack.c.h.b16 %v123
    %v581 = vunpack.c.l.b16 %v124
    %v582 = vunpack.c.h.b16 %v124
    %v583 = vunpack.c.l.b16 %v125
    %v584 = vunpack.c.h.b16 %v125
    %v585 = vunpack.c.l.b16 %v126
    %v586 = vunpack.c.h.b16 %v126
    %v587 = vunpack.c.l.b16 %v127
    %v588 = vunpack.c.h.b16 %v127
    %v589 = vunpack.c.l.b16 %v128
    %v590 = vunpack.c.h.b16 %v128
    %v591 = vunpack.c.l.b16 %v129
    %v592 = vunpack.c.h.b16 %v129
    %v593 = vunpack.c.l.b16 %v130
    %v594 = vunpack.c.h.b16 %v130
    %v595 = vunpack.c.l.b16 %v131
    %v596 = vunpack.c.h.b16 %v131
    %v597 = vunpack.c.l.b16 %v132
    %v598 = vunpack.c.h.b16 %v132
    %v599 = vunpack.c.l.b16 %v133
    %v600 = vunpack.c.h.b16 %v133
    %v601 = vunpack.c.l.b16 %v134
    %v602 = vunpack.c.h.b16 %v134
    %v603 = vunpack.c.l.b16 %v135
    %v604 = vunpack.c.h.b16 %v135
    %v605 = vunpack.c.l.b16 %v136
    %v606 = vunpack.c.h.b16 %v136
    %v607 = vunpack.c.l.b16 %v137
    %v608 = vunpack.c.h.b16 %v137
    %v609 = vunpack.c.l.b16 %v138
    %v610 = vunpack.c.h.b16 %v138
    %v611 = vunpack.c.l.b16 %v139
    %v612 = vunpack.c.h.b16 %v139
    %v613 = vunpack.c.l.b16 %v140
    %v614 = vunpack.c.h.b16 %v140
    %v615 = vunpack.c.l.b16 %v141
    %v616 = vunpack.c.h.b16 %v141
    %v617 = vunpack.c.l.b16 %v142
    %v618 = vunpack.c.h.b16 %v142
    %v619 = vunpack.c.l.b16 %v143
    %v620 = vunpack.c.h.b16 %v143
    %v621 = vunpack.c.l.b16 %v144
    %v622 = vunpack.c.h.b16 %v144
    %v623 = vunpack.c.l.b16 %v145
    %v624 = vunpack.c.h.b16 %v145
    %v625 = vunpack.c.l.b16 %v146
    %v626 = vunpack.c.h.b16 %v146
    %v627 = vunpack.c.l.b16 %v147
    %v628 = vunpack.c.h.b16 %v147
    %v629 = vunpack.c.l.b16 %v148
    %v630 = vunpack.c.h.b16 %v148
    %v631 = vunpack.c.l.b16 %v149
    %v632 = vunpack.c.h.b16 %v149
    %v633 = vunpack.c.l.b16 %v150
    %v634 = vunpack.c.h.b16 %v150
    %v635 = vunpack.c.l.b16 %v151
    %v636 = vunpack.c.h.b16 %v151
    %v637 = vunpack.c.l.b16 %v152
    %v638 = vunpack.c.h.b16 %v152
    %v639 = vunpack.c.l.b16 %v153
    %v640 = vunpack.c.h.b16 %v153
    %v641 = vunpack.c.l.b16 %v154
    %v642 = vunpack.c.h.b16 %v154
    %v643 = vunpack.c.l.b16 %v155
    %v644 = vunpack.c.h.b16 %v155
    %v645 = vunpack.c.l.b16 %v156
    %v646 = vunpack.c.h.b16 %v156
    %v647 = vunpack.c.l.b16 %v157
    %v648 = vunpack.c.h.b16 %v157
    %v649 = vunpack.c.l.b16 %v158
    %v650 = vunpack.c.h.b16 %v158
    %v651 = vunpack.c.l.b16 %v159
    %v652 = vunpack.c.h.b16 %v159
    %v653 = vunpack.c.l.b16 %v160
    %v654 = vunpack.c.h.b16 %v160
    %v655 = vunpack.c.l.b16 %v161
    %v656 = vunpack.c.h.b16 %v161
    %v657 = vunpack.c.l.b16 %v162
    %v658 = vunpack.c.h.b16 %v162
    %v659 = vunpack.c.l.b16 %v163
    %v660 = vunpack.c.h.b16 %v163
    %v661 = vunpack.c.l.b16 %v164
    %v662 = vunpack.c.h.b16 %v164
    %v663 = vunpack.c.l.b16 %v165
    %v664 = vunpack.c.h.b16 %v165
    %v665 = vunpack.c.l.b16 %v166
    %v666 = vunpack.c.h.b16 %v166
    %v667 = vunpack.c.l.b16 %v167
    %v668 = vunpack.c.h.b16 %v167
    %v669 = vunpack.c.l.b16 %v168
    %v670 = vunpack.c.h.b16 %v168
    %v671 = vunpack.c.l.b16 %v169
    %v672 = vunpack.c.h.b16 %v169
    %v673 = vunpack.c.l.b16 %v170
    %v674 = vunpack.c.h.b16 %v170
    %v675 = vunpack.c.l.b16 %v171
    %v676 = vunpack.c.h.b16 %v171
    %v677 = vunpack.c.l.b16 %v172
    %v678 = vunpack.c.h.b16 %v172
    %v679 = vunpack.c.l.b16 %v173
    %v680 = vunpack.c.h.b16 %v173
    %v681 = vunpack.c.l.b16 %v174
    %v682 = vunpack.c.h.b16 %v174
    %v683 = vunpack.c.l.b16 %v175
    %v684 = vunpack.c.h.b16 %v175
    %v685 = vunpack.c.l.b16 %v176
    %v686 = vunpack.c.h.b16 %v176
    %v687 = vunpack.c.l.b16 %v177
    %v688 = vunpack.c.h.b16 %v177
    %v689 = vunpack.c.l.b16 %v178
    %v690 = vunpack.c.h.b16 %v178
    %v691 = vunpack.c.l.b16 %v179
    %v692 = vunpack.c.h.b16 %v179
    %v693 = vunpack.c.l.b16 %v180
    %v694 = vunpack.c.h.b16 %v180
    %v695 = vunpack.c.l.b16 %v181
    %v696 = vunpack.c.h.b16 %v181
    %v697 = vunpack.c.l.b16 %v182
    %v698 = vunpack.c.h.b16 %v182
    %v699 = vunpack.c.l.b16 %v183
    %v700 = vunpack.c.h.b16 %v183
    %v701 = vunpack.c.l.b16 %v184
    %v702 = vunpack.c.h.b16 %v184
    %v703 = vunpack.c.l.b16 %v185
    %v704 = vunpack.c.h.b16 %v185
    %v705 = vunpack.c.l.b16 %v186
    %v706 = vunpack.c.h.b16 %v186
    %v707 = vunpack.c.l.b16 %v187
    %v708 = vunpack.c.h.b16 %v187
    %v709 = vunpack.c.l.b16 %v188
    %v710 = vunpack.c.h.b16 %v188
    %v711 = vunpack.c.l.b16 %v189
    %v712 = vunpack.c.h.b16 %v189
    %v713 = vunpack.c.l.b16 %v190
    %v714 = vunpack.c.h.b16 %v190
    %v715 = vunpack.c.l.b16 %v191
    %v716 = vunpack.c.h.b16 %v191
    %v717 = vunpack.c.l.b16 %v192
    %v718 = vunpack.c.h.b16 %v192
    %v719 = vunpack.c.l.b16 %v193
    %v720 = vunpack.c.h.b16 %v193
    %v721 = vunpack.c.l.b16 %v194
    %v722 = vunpack.c.h.b16 %v194
    %v723 = vunpack.c.l.b16 %v195
    %v724 = vunpack.c.h.b16 %v195
    %v725 = vunpack.c.l.b16 %v196
    %v726 = vunpack.c.h.b16 %v196
    %v727 = vunpack.c.l.b16 %v197
    %v728 = vunpack.c.h.b16 %v197
    %v729 = vunpack.c.l.b16 %v198
    %v730 = vunpack.c.h.b16 %v198
    %v731 = vunpack.c.l.b16 %v199
    %v732 = vunpack.c.h.b16 %v199
    %v733 = vunpack.c.l.b16 %v200
    %v734 = vunpack.c.h.b16 %v200
    %v735 = vunpack.c.l.b16 %v201
    %v736 = vunpack.c.h.b16 %v201
    %v737 = vunpack.c.l.b16 %v202
    %v738 = vunpack.c.h.b16 %v202
    %v739 = vunpack.c.l.b16 %v203
    %v740 = vunpack.c.h.b16 %v203
    %v741 = vunpack.c.l.b16 %v204
    %v742 = vunpack.c.h.b16 %v204
    %v743 = vunpack.c.l.b16 %v205
    %v744 = vunpack.c.h.b16 %v205
    %v745 = vunpack.c.l.b16 %v206
    %v746 = vunpack.c.h.b16 %v206
    %v747 = vunpack.c.l.b16 %v207
    %v748 = vunpack.c.h.b16 %v207
    %v749 = vunpack.c.l.b16 %v208
    %v750 = vunpack.c.h.b16 %v208
    %v751 = vunpack.c.l.b16 %v209
    %v752 = vunpack.c.h.b16 %v209
    %v753 = vunpack.c.l.b16 %v210
    %v754 = vunpack.c.h.b16 %v210
    %v755 = vunpack.c.l.b16 %v211
    %v756 = vunpack.c.h.b16 %v211
    %v757 = vunpack.c.l.b16 %v212
    %v758 = vunpack.c.h.b16 %v212
    %v759 = vunpack.c.l.b16 %v213
    %v760 = vunpack.c.h.b16 %v213
    %v761 = vunpack.c.l.b16 %v214
    %v762 = vunpack.c.h.b16 %v214
    %v763 = vunpack.c.l.b16 %v215
    %v764 = vunpack.c.h.b16 %v215
    %v765 = vunpack.c.l.b16 %v216
    %v766 = vunpack.c.h.b16 %v216
    %v767 = vunpack.c.l.b16 %v217
    %v768 = vunpack.c.h.b16 %v217
    %v769 = vunpack.c.l.b16 %v218
    %v770 = vunpack.c.h.b16 %v218
    %v771 = vunpack.c.l.b16 %v219
    %v772 = vunpack.c.h.b16 %v219
    %v773 = vunpack.c.l.b16 %v220
    %v774 = vunpack.c.h.b16 %v220
    %v775 = vunpack.c.l.b16 %v221
    %v776 = vunpack.c.h.b16 %v221
    %v777 = vunpack.c.l.b16 %v222
    %v778 = vunpack.c.h.b16 %v222
    %v779 = vunpack.c.l.b16 %v223
    %v780 = vunpack.c.h.b16 %v223
    %v781 = vunpack.c.l.b16 %v224
    %v782 = vunpack.c.h.b16 %v224
    %v783 = vunpack.c.l.b16 %v225
    %v784 = vunpack.c.h.b16 %v225
    %v785 = vunpack.c.l.b16 %v226
    %v786 = vunpack.c.h.b16 %v226
    %v787 = vunpack.c.l.b16 %v227
    %v788 = vunpack.c.h.b16 %v227
    %v789 = vunpack.c.l.b16 %v228
    %v790 = vunpack.c.h.b16 %v228
    %v791 = vunpack.c.l.b16 %v229
    %v792 = vunpack.c.h.b16 %v229
    %v793 = vunpack.c.l.b16 %v230
    %v794 = vunpack.c.h.b16 %v230
    %v795 = vunpack.c.l.b16 %v231
    %v796 = vunpack.c.h.b16 %v231
    %v797 = vunpack.c.l.b16 %v232
    %v798 = vunpack.c.h.b16 %v232
    %v799 = vunpack.c.l.b16 %v233
    %v800 = vunpack.c.h.b16 %v233
    %v801 = vunpack.c.l.b16 %v234
    %v802 = vunpack.c.h.b16 %v234
    %v803 = vunpack.c.l.b16 %v235
    %v804 = vunpack.c.h.b16 %v235
    %v805 = vunpack.c.l.b16 %v236
    %v806 = vunpack.c.h.b16 %v236
    %v807 = vunpack.c.l.b16 %v237
    %v808 = vunpack.c.h.b16 %v237
    %v809 = vunpack.c.l.b16 %v238
    %v810 = vunpack.c.h.b16 %v238
    %v811 = vunpack.c.l.b16 %v239
    %v812 = vunpack.c.h.b16 %v239
    %v813 = vunpack.c.l.b16 %v240
    %v814 = vunpack.c.h.b16 %v240
    %v815 = vunpack.c.l.b16 %v241
    %v816 = vunpack.c.h.b16 %v241
    %v817 = vunpack.c.l.b16 %v242
    %v818 = vunpack.c.h.b16 %v242
    %v819 = vunpack.c.l.b16 %v243
    %v820 = vunpack.c.h.b16 %v243
    %v821 = vunpack.c.l.b16 %v244
    %v822 = vunpack.c.h.b16 %v244
    %v823 = vunpack.c.l.b16 %v245
    %v824 = vunpack.c.h.b16 %v245
    %v825 = vunpack.c.l.b16 %v246
    %v826 = vunpack.c.h.b16 %v246
    %v827 = vunpack.c.l.b16 %v247
    %v828 = vunpack.c.h.b16 %v247
    %v829 = vunpack.c.l.b16 %v248
    %v830 = vunpack.c.h.b16 %v248
    %v831 = vunpack.c.l.b16 %v249
    %v832 = vunpack.c.h.b16 %v249
    %v833 = vunpack.c.l.b16 %v250
    %v834 = vunpack.c.h.b16 %v250
    %v835 = vunpack.c.l.b16 %v251
    %v836 = vunpack.c.h.b16 %v251
    %v837 = vunpack.c.l.b16 %v252
    %v838 = vunpack.c.h.b16 %v252
    %v839 = vunpack.c.l.b16 %v253
    %v840 = vunpack.c.h.b16 %v253
    %v841 = vunpack.c.l.b16 %v254
    %v842 = vunpack.c.h.b16 %v254
    %v843 = vunpack.c.l.b16 %v255
    %v844 = vunpack.c.h.b16 %v255
    %v845 = vunpack.c.l.b16 %v256
    %v846 = vunpack.c.h.b16 %v256
    %v847 = vpack.c.b16 %v467, %v463
    %v848 = vpack.c.b16 %v468, %v464
    %v849 = vpack.c.b16 %v469, %v465
    %v850 = vpack.c.b16 %v470, %v466
    %v851 = vpack.c.b16 %v475, %v471
    %v852 = vpack.c.b16 %v476, %v472
    %v853 = vpack.c.b16 %v477, %v473
    %v854 = vpack.c.b16 %v478, %v474
    %v855 = vpack.c.b16 %v483, %v479
    %v856 = vpack.c.b16 %v484, %v480
    %v857 = vpack.c.b16 %v485, %v481
    %v858 = vpack.c.b16 %v486, %v482
    %v859 = vpack.c.b16 %v491, %v487
    %v860 = vpack.c.b16 %v492, %v488
    %v861 = vpack.c.b16 %v493, %v489
    %v862 = vpack.c.b16 %v494, %v490
    %v863 = vpack.c.b16 %v499, %v495
    %v864 = vpack.c.b16 %v500, %v496
    %v865 = vpack.c.b16 %v501, %v497
    %v866 = vpack.c.b16 %v502, %v498
    %v867 = vpack.c.b16 %v507, %v503
    %v868 = vpack.c.b16 %v508, %v504
    %v869 = vpack.c.b16 %v509, %v505
    %v870 = vpack.c.b16 %v510, %v506
    %v871 = vpack.c.b16 %v515, %v511
    %v872 = vpack.c.b16 %v516, %v512
    %v873 = vpack.c.b16 %v517, %v513
    %v874 = vpack.c.b16 %v518, %v514
    %v875 = vpack.c.b16 %v523, %v519
    %v876 = vpack.c.b16 %v524, %v520
    %v877 = vpack.c.b16 %v525, %v521
    %v878 = vpack.c.b16 %v526, %v522
    %v879 = vpack.c.b16 %v531, %v527
    %v880 = vpack.c.b16 %v532, %v528
    %v881 = vpack.c.b16 %v533, %v529
    %v882 = vpack.c.b16 %v534, %v530
    %v883 = vpack.c.b16 %v539, %v535
    %v884 = vpack.c.b16 %v540, %v536
    %v885 = vpack.c.b16 %v541, %v537
    %v886 = vpack.c.b16 %v542, %v538
    %v887 = vpack.c.b16 %v547, %v543
    %v888 = vpack.c.b16 %v548, %v544
    %v889 = vpack.c.b16 %v549, %v545
    %v890 = vpack.c.b16 %v550, %v546
    %v891 = vpack.c.b16 %v555, %v551
    %v892 = vpack.c.b16 %v556, %v552
    %v893 = vpack.c.b16 %v557, %v553
    %v894 = vpack.c.b16 %v558, %v554
    %v895 = vpack.c.b16 %v563, %v559
    %v896 = vpack.c.b16 %v564, %v560
    %v897 = vpack.c.b16 %v565, %v561
    %v898 = vpack.c.b16 %v566, %v562
    %v899 = vpack.c.b16 %v571, %v567
    %v900 = vpack.c.b16 %v572, %v568
    %v901 = vpack.c.b16 %v573, %v569
    %v902 = vpack.c.b16 %v574, %v570
    %v903 = vpack.c.b16 %v579, %v575
    %v904 = vpack.c.b16 %v580, %v576
    %v905 = vpack.c.b16 %v581, %v577
    %v906 = vpack.c.b16 %v582, %v578
    %v907 = vpack.c.b16 %v587, %v583
    %v908 = vpack.c.b16 %v588, %v584
    %v909 = vpack.c.b16 %v589, %v585
    %v910 = vpack.c.b16 %v590, %v586
    %v911 = vpack.c.b16 %v595, %v591
    %v912 = vpack.c.b16 %v596, %v592
    %v913 = vpack.c.b16 %v597, %v593
    %v914 = vpack.c.b16 %v598, %v594
    %v915 = vpack.c.b16 %v603, %v599
    %v916 = vpack.c.b16 %v604, %v600
    %v917 = vpack.c.b16 %v605, %v601
    %v918 = vpack.c.b16 %v606, %v602
    %v919 = vpack.c.b16 %v611, %v607
    %v920 = vpack.c.b16 %v612, %v608
    %v921 = vpack.c.b16 %v613, %v609
    %v922 = vpack.c.b16 %v614, %v610
    %v923 = vpack.c.b16 %v619, %v615
    %v924 = vpack.c.b16 %v620, %v616
    %v925 = vpack.c.b16 %v621, %v617
    %v926 = vpack.c.b16 %v622, %v618
    %v927 = vpack.c.b16 %v627, %v623
    %v928 = vpack.c.b16 %v628, %v624
    %v929 = vpack.c.b16 %v629, %v625
    %v930 = vpack.c.b16 %v630, %v626
    %v931 = vpack.c.b16 %v635, %v631
    %v932 = vpack.c.b16 %v636, %v632
    %v933 = vpack.c.b16 %v637, %v633
    %v934 = vpack.c.b16 %v638, %v634
    %v935 = vpack.c.b16 %v643, %v639
    %v936 = vpack.c.b16 %v644, %v640
    %v937 = vpack.c.b16 %v645, %v641
    %v938 = vpack.c.b16 %v646, %v642
    %v939 = vpack.c.b16 %v651, %v647
    %v940 = vpack.c.b16 %v652, %v648
    %v941 = vpack.c.b16 %v653, %v649
    %v942 = vpack.c.b16 %v654, %v650
    %v943 = vpack.c.b16 %v659, %v655
    %v944 = vpack.c.b16 %v660, %v656
    %v945 = vpack.c.b16 %v661, %v657
    %v946 = vpack.c.b16 %v662, %v658
    %v947 = vpack.c.b16 %v667, %v663
    %v948 = vpack.c.b16 %v668, %v664
    %v949 = vpack.c.b16 %v669, %v665
    %v950 = vpack.c.b16 %v670, %v666
    %v951 = vpack.c.b16 %v675, %v671
    %v952 = vpack.c.b16 %v676, %v672
    %v953 = vpack.c.b16 %v677, %v673
    %v954 = vpack.c.b16 %v678, %v674
    %v955 = vpack.c.b16 %v683, %v679
    %v956 = vpack.c.b16 %v684, %v680
    %v957 = vpack.c.b16 %v685, %v681
    %v958 = vpack.c.b16 %v686, %v682
    %v959 = vpack.c.b16 %v691, %v687
    %v960 = vpack.c.b16 %v692, %v688
    %v961 = vpack.c.b16 %v693, %v689
    %v962 = vpack.c.b16 %v694, %v690
    %v963 = vpack.c.b16 %v699, %v695
    %v964 = vpack.c.b16 %v700, %v696
    %v965 = vpack.c.b16 %v701, %v697
    %v966 = vpack.c.b16 %v702, %v698
    %v967 = vpack.c.b16 %v707, %v703
    %v968 = vpack.c.b16 %v708, %v704
    %v969 = vpack.c.b16 %v709, %v705
    %v970 = vpack.c.b16 %v710, %v706
    %v971 = vpack.c.b16 %v715, %v711
    %v972 = vpack.c.b16 %v716, %v712
    %v973 = vpack.c.b16 %v717, %v713
    %v974 = vpack.c.b16 %v718, %v714
    %v975 = vpack.c.b16 %v723, %v719
    %v976 = vpack.c.b16 %v724, %v720
    %v977 = vpack.c.b16 %v725, %v721
    %v978 = vpack.c.b16 %v726, %v722
    %v979 = vpack.c.b16 %v731, %v727
    %v980 = vpack.c.b16 %v732, %v728
    %v981 = vpack.c.b16 %v733, %v729
    %v982 = vpack.c.b16 %v734, %v730
    %v983 = vpack.c.b16 %v739, %v735
    %v984 = vpack.c.b16 %v740, %v736
    %v985 = vpack.c.b16 %v741, %v737
    %v986 = vpack.c.b16 %v742, %v738
    %v987 = vpack.c.b16 %v747, %v743
    %v988 = vpack.c.b16 %v748, %v744
    %v989 = vpack.c.b16 %v749, %v745
    %v990 = vpack.c.b16 %v750, %v746
    %v991 = vpack.c.b16 %v755, %v751
    %v992 = vpack.c.b16 %v756, %v752
    %v993 = vpack.c.b16 %v757, %v753
    %v994 = vpack.c.b16 %v758, %v754
    %v995 = vpack.c.b16 %v763, %v759
    %v996 = vpack.c.b16 %v764, %v760
    %v997 = vpack.c.b16 %v765, %v761
    %v998 = vpack.c.b16 %v766, %v762
    %v999 = vpack.c.b16 %v771, %v767
    %v1000 = vpack.c.b16 %v772, %v768
    %v1001 = vpack.c.b16 %v773, %v769
    %v1002 = vpack.c.b16 %v774, %v770
    %v1003 = vpack.c.b16 %v779, %v775
    %v1004 = vpack.c.b16 %v780, %v776
    %v1005 = vpack.c.b16 %v781, %v777
    %v1006 = vpack.c.b16 %v782, %v778
    %v1007 = vpack.c.b16 %v787, %v783
    %v1008 = vpack.c.b16 %v788, %v784
    %v1009 = vpack.c.b16 %v789, %v785
    %v1010 = vpack.c.b16 %v790, %v786
    %v1011 = vpack.c.b16 %v795, %v791
    %v1012 = vpack.c.b16 %v796, %v792
    %v1013 = vpack.c.b16 %v797, %v793
    %v1014 = vpack.c.b16 %v798, %v794
    %v1015 = vpack.c.b16 %v803, %v799
    %v1016 = vpack.c.b16 %v804, %v800
    %v1017 = vpack.c.b16 %v805, %v801
    %v1018 = vpack.c.b16 %v806, %v802
    %v1019 = vpack.c.b16 %v811, %v807
    %v1020 = vpack.c.b16 %v812, %v808
    %v1021 = vpack.c.b16 %v813, %v809
    %v1022 = vpack.c.b16 %v814, %v810
    %v1023 = vpack.c.b16 %v819, %v815
    %v1024 = vpack.c.b16 %v820, %v816
    %v1025 = vpack.c.b16 %v821, %v817
    %v1026 = vpack.c.b16 %v822, %v818
    %v1027 = vpack.c.b16 %v827, %v823
    %v1028 = vpack.c.b16 %v828, %v824
    %v1029 = vpack.c.b16 %v829, %v825
    %v1030 = vpack.c.b16 %v830, %v826
    %v1031 = vpack.c.b16 %v835, %v831
    %v1032 = vpack.c.b16 %v836, %v832
    %v1033 = vpack.c.b16 %v837, %v833
    %v1034 = vpack.c.b16 %v838, %v834
    %v1035 = vpack.c.b16 %v843, %v839
    %v1036 = vpack.c.b16 %v844, %v840
    %v1037 = vpack.c.b16 %v845, %v841
    %v1038 = vpack.c.b16 %v846, %v842
    %1231 = vmatpush.bf16.msra.mxu0 %v875
    %1232 = vmatpush.bf16.msra.mxu0 %v871
    %1233 = vmatpush.bf16.msra.mxu0 %v867
    %1234 = vmatpush.bf16.msra.mxu0 %v863
    %1235 = vmatpush.bf16.msra.mxu0 %v859
    %1236 = vmatpush.bf16.msra.mxu0 %v855
    %1237 = vmatpush.bf16.msra.mxu0 %v851
    %1238 = vmatpush.bf16.msra.mxu0 %v847
    %1239 = vmatmul.bf16.gmra.mxu0 %v259
    %v1240 = vpop.f32.mrf.mxu0
    %v1241 = vadd.f32 0.0, %v1240
    %v1242 = vpop.f32.mrf.mxu0
    %1243 = vdwg.mxu0
    %1244 = vmatpush.bf16.msra.mxu0 %v907
    %1245 = vmatpush.bf16.msra.mxu0 %v903
    %1246 = vmatpush.bf16.msra.mxu0 %v899
    %1247 = vmatpush.bf16.msra.mxu0 %v895
    %1248 = vmatpush.bf16.msra.mxu0 %v891
    %1249 = vmatpush.bf16.msra.mxu0 %v887
    %1250 = vmatpush.bf16.msra.mxu0 %v883
    %1251 = vmatpush.bf16.msra.mxu0 %v879
    %1252 = vmatmul.bf16.gmra.mxu0 %v260
    %v1253 = vpop.f32.mrf.mxu0
    %v1254 = vadd.f32 %v1241, %v1253
    %v1255 = vpop.f32.mrf.mxu0
    %1256 = vdwg.mxu0
    %1257 = vmatpush.bf16.msra.mxu0 %v939
    %1258 = vmatpush.bf16.msra.mxu0 %v935
    %1259 = vmatpush.bf16.msra.mxu0 %v931
    %1260 = vmatpush.bf16.msra.mxu0 %v927
    %1261 = vmatpush.bf16.msra.mxu0 %v923
    %1262 = vmatpush.bf16.msra.mxu0 %v919
    %1263 = vmatpush.bf16.msra.mxu0 %v915
    %1264 = vmatpush.bf16.msra.mxu0 %v911
    %1265 = vmatmul.bf16.gmra.mxu0 %v261
    %v1266 = vpop.f32.mrf.mxu0
    %v1267 = vadd.f32 %v1254, %v1266
    %v1268 = vpop.f32.mrf.mxu0
    %1269 = vdwg.mxu0
    %1270 = vmatpush.bf16.msra.mxu0 %v971
    %1271 = vmatpush.bf16.msra.mxu0 %v967
    %1272 = vmatpush.bf16.msra.mxu0 %v963
    %1273 = vmatpush.bf16.msra.mxu0 %v959
    %1274 = vmatpush.bf16.msra.mxu0 %v955
    %1275 = vmatpush.bf16.msra.mxu0 %v951
    %1276 = vmatpush.bf16.msra.mxu0 %v947
    %1277 = vmatpush.bf16.msra.mxu0 %v943
    %1278 = vmatmul.bf16.gmra.mxu0 %v262
    %v1279 = vpop.f32.mrf.mxu0
    %v1280 = vadd.f32 %v1267, %v1279
    %v1281 = vpop.f32.mrf.mxu0
    %1282 = vdwg.mxu0
    %1283 = vmatpush.bf16.msra.mxu0 %v1003
    %1284 = vmatpush.bf16.msra.mxu0 %v999
    %1285 = vmatpush.bf16.msra.mxu0 %v995
    %1286 = vmatpush.bf16.msra.mxu0 %v991
    %1287 = vmatpush.bf16.msra.mxu0 %v987
    %1288 = vmatpush.bf16.msra.mxu0 %v983
    %1289 = vmatpush.bf16.msra.mxu0 %v979
    %1290 = vmatpush.bf16.msra.mxu0 %v975
    %1291 = vmatmul.bf16.gmra.mxu0 %v263
    %v1292 = vpop.f32.mrf.mxu0
    %v1293 = vadd.f32 %v1280, %v1292
    %v1294 = vpop.f32.mrf.mxu0
    %1295 = vdwg.mxu0
    %1296 = vmatpush.bf16.msra.mxu0 %v1035
    %1297 = vmatpush.bf16.msra.mxu0 %v1031
    %1298 = vmatpush.bf16.msra.mxu0 %v1027
    %1299 = vmatpush.bf16.msra.mxu0 %v1023
    %1300 = vmatpush.bf16.msra.mxu0 %v1019
    %1301 = vmatpush.bf16.msra.mxu0 %v1015
    %1302 = vmatpush.bf16.msra.mxu0 %v1011
    %1303 = vmatpush.bf16.msra.mxu0 %v1007
    %1304 = vmatmul.bf16.gmra.mxu0 %v264
    %v1305 = vpop.f32.mrf.mxu0
    %v1306 = vadd.f32 %v1293, %v1305
    %v1307 = vpop.f32.mrf.mxu0
    %1308 = vdwg.mxu0
    %1309 = vmatpush.bf16.msra.mxu0 %v876
    %1310 = vmatpush.bf16.msra.mxu0 %v872
    %1311 = vmatpush.bf16.msra.mxu0 %v868
    %1312 = vmatpush.bf16.msra.mxu0 %v864
    %1313 = vmatpush.bf16.msra.mxu0 %v860
    %1314 = vmatpush.bf16.msra.mxu0 %v856
    %1315 = vmatpush.bf16.msra.mxu0 %v852
    %1316 = vmatpush.bf16.msra.mxu0 %v848
    %1317 = vmatmul.bf16.gmra.mxu0 %v259
    %v1318 = vpop.f32.mrf.mxu0
    %v1319 = vadd.f32 0.0, %v1318
    %v1320 = vpop.f32.mrf.mxu0
    %1321 = vdwg.mxu0
    %1322 = vmatpush.bf16.msra.mxu0 %v908
    %1323 = vmatpush.bf16.msra.mxu0 %v904
    %1324 = vmatpush.bf16.msra.mxu0 %v900
    %1325 = vmatpush.bf16.msra.mxu0 %v896
    %1326 = vmatpush.bf16.msra.mxu0 %v892
    %1327 = vmatpush.bf16.msra.mxu0 %v888
    %1328 = vmatpush.bf16.msra.mxu0 %v884
    %1329 = vmatpush.bf16.msra.mxu0 %v880
    %1330 = vmatmul.bf16.gmra.mxu0 %v260
    %v1331 = vpop.f32.mrf.mxu0
    %v1332 = vadd.f32 %v1319, %v1331
    %v1333 = vpop.f32.mrf.mxu0
    %1334 = vdwg.mxu0
    %1335 = vmatpush.bf16.msra.mxu0 %v940
    %1336 = vmatpush.bf16.msra.mxu0 %v936
    %1337 = vmatpush.bf16.msra.mxu0 %v932
    %1338 = vmatpush.bf16.msra.mxu0 %v928
    %1339 = vmatpush.bf16.msra.mxu0 %v924
    %1340 = vmatpush.bf16.msra.mxu0 %v920
    %1341 = vmatpush.bf16.msra.mxu0 %v916
    %1342 = vmatpush.bf16.msra.mxu0 %v912
    %1343 = vmatmul.bf16.gmra.mxu0 %v261
    %v1344 = vpop.f32.mrf.mxu0
    %v1345 = vadd.f32 %v1332, %v1344
    %v1346 = vpop.f32.mrf.mxu0
    %1347 = vdwg.mxu0
    %1348 = vmatpush.bf16.msra.mxu0 %v972
    %1349 = vmatpush.bf16.msra.mxu0 %v968
    %1350 = vmatpush.bf16.msra.mxu0 %v964
    %1351 = vmatpush.bf16.msra.mxu0 %v960
    %1352 = vmatpush.bf16.msra.mxu0 %v956
    %1353 = vmatpush.bf16.msra.mxu0 %v952
    %1354 = vmatpush.bf16.msra.mxu0 %v948
    %1355 = vmatpush.bf16.msra.mxu0 %v944
    %1356 = vmatmul.bf16.gmra.mxu0 %v262
    %v1357 = vpop.f32.mrf.mxu0
    %v1358 = vadd.f32 %v1345, %v1357
    %v1359 = vpop.f32.mrf.mxu0
    %1360 = vdwg.mxu0
    %1361 = vmatpush.bf16.msra.mxu0 %v1004
    %1362 = vmatpush.bf16.msra.mxu0 %v1000
    %1363 = vmatpush.bf16.msra.mxu0 %v996
    %1364 = vmatpush.bf16.msra.mxu0 %v992
    %1365 = vmatpush.bf16.msra.mxu0 %v988
    %1366 = vmatpush.bf16.msra.mxu0 %v984
    %1367 = vmatpush.bf16.msra.mxu0 %v980
    %1368 = vmatpush.bf16.msra.mxu0 %v976
    %1369 = vmatmul.bf16.gmra.mxu0 %v263
    %v1370 = vpop.f32.mrf.mxu0
    %v1371 = vadd.f32 %v1358, %v1370
    %v1372 = vpop.f32.mrf.mxu0
    %1373 = vdwg.mxu0
    %1374 = vmatpush.bf16.msra.mxu0 %v1036
    %1375 = vmatpush.bf16.msra.mxu0 %v1032
    %1376 = vmatpush.bf16.msra.mxu0 %v1028
    %1377 = vmatpush.bf16.msra.mxu0 %v1024
    %1378 = vmatpush.bf16.msra.mxu0 %v1020
    %1379 = vmatpush.bf16.msra.mxu0 %v1016
    %1380 = vmatpush.bf16.msra.mxu0 %v1012
    %1381 = vmatpush.bf16.msra.mxu0 %v1008
    %1382 = vmatmul.bf16.gmra.mxu0 %v264
    %v1383 = vpop.f32.mrf.mxu0
    %v1384 = vadd.f32 %v1371, %v1383
    %v1385 = vpop.f32.mrf.mxu0
    %1386 = vdwg.mxu0
    %1387 = vmatpush.bf16.msra.mxu0 %v877
    %1388 = vmatpush.bf16.msra.mxu0 %v873
    %1389 = vmatpush.bf16.msra.mxu0 %v869
    %1390 = vmatpush.bf16.msra.mxu0 %v865
    %1391 = vmatpush.bf16.msra.mxu0 %v861
    %1392 = vmatpush.bf16.msra.mxu0 %v857
    %1393 = vmatpush.bf16.msra.mxu0 %v853
    %1394 = vmatpush.bf16.msra.mxu0 %v849
    %1395 = vmatmul.bf16.gmra.mxu0 %v259
    %v1396 = vpop.f32.mrf.mxu0
    %v1397 = vadd.f32 0.0, %v1396
    %v1398 = vpop.f32.mrf.mxu0
    %1399 = vdwg.mxu0
    %1400 = vmatpush.bf16.msra.mxu0 %v909
    %1401 = vmatpush.bf16.msra.mxu0 %v905
    %1402 = vmatpush.bf16.msra.mxu0 %v901
    %1403 = vmatpush.bf16.msra.mxu0 %v897
    %1404 = vmatpush.bf16.msra.mxu0 %v893
    %1405 = vmatpush.bf16.msra.mxu0 %v889
    %1406 = vmatpush.bf16.msra.mxu0 %v885
    %1407 = vmatpush.bf16.msra.mxu0 %v881
    %1408 = vmatmul.bf16.gmra.mxu0 %v260
    %v1409 = vpop.f32.mrf.mxu0
    %v1410 = vadd.f32 %v1397, %v1409
    %v1411 = vpop.f32.mrf.mxu0
    %1412 = vdwg.mxu0
    %1413 = vmatpush.bf16.msra.mxu0 %v941
    %1414 = vmatpush.bf16.msra.mxu0 %v937
    %1415 = vmatpush.bf16.msra.mxu0 %v933
    %1416 = vmatpush.bf16.msra.mxu0 %v929
    %1417 = vmatpush.bf16.msra.mxu0 %v925
    %1418 = vmatpush.bf16.msra.mxu0 %v921
    %1419 = vmatpush.bf16.msra.mxu0 %v917
    %1420 = vmatpush.bf16.msra.mxu0 %v913
    %1421 = vmatmul.bf16.gmra.mxu0 %v261
    %v1422 = vpop.f32.mrf.mxu0
    %v1423 = vadd.f32 %v1410, %v1422
    %v1424 = vpop.f32.mrf.mxu0
    %1425 = vdwg.mxu0
    %1426 = vmatpush.bf16.msra.mxu0 %v973
    %1427 = vmatpush.bf16.msra.mxu0 %v969
    %1428 = vmatpush.bf16.msra.mxu0 %v965
    %1429 = vmatpush.bf16.msra.mxu0 %v961
    %1430 = vmatpush.bf16.msra.mxu0 %v957
    %1431 = vmatpush.bf16.msra.mxu0 %v953
    %1432 = vmatpush.bf16.msra.mxu0 %v949
    %1433 = vmatpush.bf16.msra.mxu0 %v945
    %1434 = vmatmul.bf16.gmra.mxu0 %v262
    %v1435 = vpop.f32.mrf.mxu0
    %v1436 = vadd.f32 %v1423, %v1435
    %v1437 = vpop.f32.mrf.mxu0
    %1438 = vdwg.mxu0
    %1439 = vmatpush.bf16.msra.mxu0 %v1005
    %1440 = vmatpush.bf16.msra.mxu0 %v1001
    %1441 = vmatpush.bf16.msra.mxu0 %v997
    %1442 = vmatpush.bf16.msra.mxu0 %v993
    %1443 = vmatpush.bf16.msra.mxu0 %v989
    %1444 = vmatpush.bf16.msra.mxu0 %v985
    %1445 = vmatpush.bf16.msra.mxu0 %v981
    %1446 = vmatpush.bf16.msra.mxu0 %v977
    %1447 = vmatmul.bf16.gmra.mxu0 %v263
    %v1448 = vpop.f32.mrf.mxu0
    %v1449 = vadd.f32 %v1436, %v1448
    %v1450 = vpop.f32.mrf.mxu0
    %1451 = vdwg.mxu0
    %1452 = vmatpush.bf16.msra.mxu0 %v1037
    %1453 = vmatpush.bf16.msra.mxu0 %v1033
    %1454 = vmatpush.bf16.msra.mxu0 %v1029
    %1455 = vmatpush.bf16.msra.mxu0 %v1025
    %1456 = vmatpush.bf16.msra.mxu0 %v1021
    %1457 = vmatpush.bf16.msra.mxu0 %v1017
    %1458 = vmatpush.bf16.msra.mxu0 %v1013
    %1459 = vmatpush.bf16.msra.mxu0 %v1009
    %1460 = vmatmul.bf16.gmra.mxu0 %v264
    %v1461 = vpop.f32.mrf.mxu0
    %v1462 = vadd.f32 %v1449, %v1461
    %v1463 = vpop.f32.mrf.mxu0
    %1464 = vdwg.mxu0
    %1465 = vmatpush.bf16.msra.mxu0 %v878
    %1466 = vmatpush.bf16.msra.mxu0 %v874
    %1467 = vmatpush.bf16.msra.mxu0 %v870
    %1468 = vmatpush.bf16.msra.mxu0 %v866
    %1469 = vmatpush.bf16.msra.mxu0 %v862
    %1470 = vmatpush.bf16.msra.mxu0 %v858
    %1471 = vmatpush.bf16.msra.mxu0 %v854
    %1472 = vmatpush.bf16.msra.mxu0 %v850
    %1473 = vmatmul.bf16.gmra.mxu0 %v259
    %v1474 = vpop.f32.mrf.mxu0
    %v1475 = vadd.f32 0.0, %v1474
    %v1476 = vpop.f32.mrf.mxu0
    %1477 = vdwg.mxu0
    %1478 = vmatpush.bf16.msra.mxu0 %v910
    %1479 = vmatpush.bf16.msra.mxu0 %v906
    %1480 = vmatpush.bf16.msra.mxu0 %v902
    %1481 = vmatpush.bf16.msra.mxu0 %v898
    %1482 = vmatpush.bf16.msra.mxu0 %v894
    %1483 = vmatpush.bf16.msra.mxu0 %v890
    %1484 = vmatpush.bf16.msra.mxu0 %v886
    %1485 = vmatpush.bf16.msra.mxu0 %v882
    %1486 = vmatmul.bf16.gmra.mxu0 %v260
    %v1487 = vpop.f32.mrf.mxu0
    %v1488 = vadd.f32 %v1475, %v1487
    %v1489 = vpop.f32.mrf.mxu0
    %1490 = vdwg.mxu0
    %1491 = vmatpush.bf16.msra.mxu0 %v942
    %1492 = vmatpush.bf16.msra.mxu0 %v938
    %1493 = vmatpush.bf16.msra.mxu0 %v934
    %1494 = vmatpush.bf16.msra.mxu0 %v930
    %1495 = vmatpush.bf16.msra.mxu0 %v926
    %1496 = vmatpush.bf16.msra.mxu0 %v922
    %1497 = vmatpush.bf16.msra.mxu0 %v918
    %1498 = vmatpush.bf16.msra.mxu0 %v914
    %1499 = vmatmul.bf16.gmra.mxu0 %v261
    %v1500 = vpop.f32.mrf.mxu0
    %v1501 = vadd.f32 %v1488, %v1500
    %v1502 = vpop.f32.mrf.mxu0
    %1503 = vdwg.mxu0
    %1504 = vmatpush.bf16.msra.mxu0 %v974
    %1505 = vmatpush.bf16.msra.mxu0 %v970
    %1506 = vmatpush.bf16.msra.mxu0 %v966
    %1507 = vmatpush.bf16.msra.mxu0 %v962
    %1508 = vmatpush.bf16.msra.mxu0 %v958
    %1509 = vmatpush.bf16.msra.mxu0 %v954
    %1510 = vmatpush.bf16.msra.mxu0 %v950
    %1511 = vmatpush.bf16.msra.mxu0 %v946
    %1512 = vmatmul.bf16.gmra.mxu0 %v262
    %v1513 = vpop.f32.mrf.mxu0
    %v1514 = vadd.f32 %v1501, %v1513
    %v1515 = vpop.f32.mrf.mxu0
    %1516 = vdwg.mxu0
    %1517 = vmatpush.bf16.msra.mxu0 %v1006
    %1518 = vmatpush.bf16.msra.mxu0 %v1002
    %1519 = vmatpush.bf16.msra.mxu0 %v998
    %1520 = vmatpush.bf16.msra.mxu0 %v994
    %1521 = vmatpush.bf16.msra.mxu0 %v990
    %1522 = vmatpush.bf16.msra.mxu0 %v986
    %1523 = vmatpush.bf16.msra.mxu0 %v982
    %1524 = vmatpush.bf16.msra.mxu0 %v978
    %1525 = vmatmul.bf16.gmra.mxu0 %v263
    %v1526 = vpop.f32.mrf.mxu0
    %v1527 = vadd.f32 %v1514, %v1526
    %v1528 = vpop.f32.mrf.mxu0
    %1529 = vdwg.mxu0
    %1530 = vmatpush.bf16.msra.mxu0 %v1038
    %1531 = vmatpush.bf16.msra.mxu0 %v1034
    %1532 = vmatpush.bf16.msra.mxu0 %v1030
    %1533 = vmatpush.bf16.msra.mxu0 %v1026
    %1534 = vmatpush.bf16.msra.mxu0 %v1022
    %1535 = vmatpush.bf16.msra.mxu0 %v1018
    %1536 = vmatpush.bf16.msra.mxu0 %v1014
    %1537 = vmatpush.bf16.msra.mxu0 %v1010
    %1538 = vmatmul.bf16.gmra.mxu0 %v264
    %v1539 = vpop.f32.mrf.mxu0
    %v1540 = vadd.f32 %v1527, %v1539
    %v1541 = vpop.f32.mrf.mxu0
    %1542 = vdwg.mxu0
    %vm1543 = vcmp.ge.f32.partialorder %v1306, 0.0
    %vm1544 = vcmp.ge.f32.partialorder %v1384, 0.0
    %vm1545 = vcmp.ge.f32.partialorder %v1462, 0.0
    %vm1546 = vcmp.ge.f32.partialorder %v1540, 0.0
    %v1547 = vmul.f32 %v1306, 0.2
    %v1548 = vmul.f32 %v1384, 0.2
    %v1549 = vmul.f32 %v1462, 0.2
    %v1550 = vmul.f32 %v1540, 0.2
    %v1551 = vsel %vm1543, %v1306, %v1547
    %v1552 = vsel %vm1544, %v1384, %v1548
    %v1553 = vsel %vm1545, %v1462, %v1549
    %v1554 = vsel %vm1546, %v1540, %v1550
    %v1555 = vpack.c.bf16 %v1551, %v1551
    %v1556 = vpack.c.bf16 %v1552, %v1552
    %v1557 = vpack.c.bf16 %v1553, %v1553
    %v1558 = vpack.c.bf16 %v1554, %v1554
    %v1559 = vld [vmem:[%s2] sm:$0xff]
    %v1560 = vld [vmem:[%s2 + $0x8] sm:$0xff]
    %v1561 = vld [vmem:[%s2 + $0x10] sm:$0xff]
    %v1562 = vld [vmem:[%s2 + $0x18] sm:$0xff]
    %v1563 = vld [vmem:[%s2 + $0x20] sm:$0xff]
    %v1564 = vld [vmem:[%s2 + $0x28] sm:$0xff]
    %v1565 = vld [vmem:[%s2 + $0x30] sm:$0xff]
    %v1566 = vld [vmem:[%s2 + $0x38] sm:$0xff]
    %v1567 = vld [vmem:[%s2 + $0x40] sm:$0xff]
    %v1568 = vld [vmem:[%s2 + $0x48] sm:$0xff]
    %v1569 = vld [vmem:[%s2 + $0x50] sm:$0xff]
    %v1570 = vld [vmem:[%s2 + $0x58] sm:$0xff]
    %v1571 = vld [vmem:[%s2 + $0x60] sm:$0xff]
    %v1572 = vld [vmem:[%s2 + $0x68] sm:$0xff]
    %v1573 = vld [vmem:[%s2 + $0x70] sm:$0xff]
    %v1574 = vld [vmem:[%s2 + $0x78] sm:$0xff]
    %v1575 = vld [vmem:[%s2 + $0x80] sm:$0xff]
    %v1576 = vld [vmem:[%s2 + $0x88] sm:$0xff]
    %v1577 = vld [vmem:[%s2 + $0x90] sm:$0xff]
    %v1578 = vld [vmem:[%s2 + $0x98] sm:$0xff]
    %v1579 = vld [vmem:[%s2 + $0xa0] sm:$0xff]
    %v1580 = vld [vmem:[%s2 + $0xa8] sm:$0xff]
    %v1581 = vld [vmem:[%s2 + $0xb0] sm:$0xff]
    %v1582 = vld [vmem:[%s2 + $0xb8] sm:$0xff]
    %v1583 = vld [vmem:[%s2 + $0xc0] sm:$0xff]
    %v1584 = vld [vmem:[%s2 + $0xc8] sm:$0xff]
    %v1585 = vld [vmem:[%s2 + $0xd0] sm:$0xff]
    %v1586 = vld [vmem:[%s2 + $0xd8] sm:$0xff]
    %v1587 = vld [vmem:[%s2 + $0xe0] sm:$0xff]
    %v1588 = vld [vmem:[%s2 + $0xe8] sm:$0xff]
    %v1589 = vld [vmem:[%s2 + $0xf0] sm:$0xff]
    %v1590 = vld [vmem:[%s2 + $0xf8] sm:$0xff]
    %v1591 = vld [vmem:[%s2 + $0x100] sm:$0xff]
    %v1592 = vld [vmem:[%s2 + $0x108] sm:$0xff]
    %v1593 = vld [vmem:[%s2 + $0x110] sm:$0xff]
    %v1594 = vld [vmem:[%s2 + $0x118] sm:$0xff]
    %v1595 = vld [vmem:[%s2 + $0x120] sm:$0xff]
    %v1596 = vld [vmem:[%s2 + $0x128] sm:$0xff]
    %v1597 = vld [vmem:[%s2 + $0x130] sm:$0xff]
    %v1598 = vld [vmem:[%s2 + $0x138] sm:$0xff]
    %v1599 = vld [vmem:[%s2 + $0x140] sm:$0xff]
    %v1600 = vld [vmem:[%s2 + $0x148] sm:$0xff]
    %v1601 = vld [vmem:[%s2 + $0x150] sm:$0xff]
    %v1602 = vld [vmem:[%s2 + $0x158] sm:$0xff]
    %v1603 = vld [vmem:[%s2 + $0x160] sm:$0xff]
    %v1604 = vld [vmem:[%s2 + $0x168] sm:$0xff]
    %v1605 = vld [vmem:[%s2 + $0x170] sm:$0xff]
    %v1606 = vld [vmem:[%s2 + $0x178] sm:$0xff]
    %v1607 = vld [vmem:[%s2 + $0x180] sm:$0xff]
    %v1608 = vld [vmem:[%s2 + $0x188] sm:$0xff]
    %v1609 = vld [vmem:[%s2 + $0x190] sm:$0xff]
    %v1610 = vld [vmem:[%s2 + $0x198] sm:$0xff]
    %v1611 = vld [vmem:[%s2 + $0x1a0] sm:$0xff]
    %v1612 = vld [vmem:[%s2 + $0x1a8] sm:$0xff]
    %v1613 = vld [vmem:[%s2 + $0x1b0] sm:$0xff]
    %v1614 = vld [vmem:[%s2 + $0x1b8] sm:$0xff]
    %v1615 = vld [vmem:[%s2 + $0x1c0] sm:$0xff]
    %v1616 = vld [vmem:[%s2 + $0x1c8] sm:$0xff]
    %v1617 = vld [vmem:[%s2 + $0x1d0] sm:$0xff]
    %v1618 = vld [vmem:[%s2 + $0x1d8] sm:$0xff]
    %v1619 = vld [vmem:[%s2 + $0x1e0] sm:$0xff]
    %v1620 = vld [vmem:[%s2 + $0x1e8] sm:$0xff]
    %v1621 = vld [vmem:[%s2 + $0x1f0] sm:$0xff]
    %v1622 = vld [vmem:[%s2 + $0x1f8] sm:$0xff]
    %v1687 = vunpack.c.l.b16 %v1559
    %v1688 = vunpack.c.h.b16 %v1559
    %v1689 = vunpack.c.l.b16 %v1560
    %v1690 = vunpack.c.h.b16 %v1560
    %v1691 = vunpack.c.l.b16 %v1561
    %v1692 = vunpack.c.h.b16 %v1561
    %v1693 = vunpack.c.l.b16 %v1562
    %v1694 = vunpack.c.h.b16 %v1562
    %v1695 = vunpack.c.l.b16 %v1563
    %v1696 = vunpack.c.h.b16 %v1563
    %v1697 = vunpack.c.l.b16 %v1564
    %v1698 = vunpack.c.h.b16 %v1564
    %v1699 = vunpack.c.l.b16 %v1565
    %v1700 = vunpack.c.h.b16 %v1565
    %v1701 = vunpack.c.l.b16 %v1566
    %v1702 = vunpack.c.h.b16 %v1566
    %v1703 = vunpack.c.l.b16 %v1567
    %v1704 = vunpack.c.h.b16 %v1567
    %v1705 = vunpack.c.l.b16 %v1568
    %v1706 = vunpack.c.h.b16 %v1568
    %v1707 = vunpack.c.l.b16 %v1569
    %v1708 = vunpack.c.h.b16 %v1569
    %v1709 = vunpack.c.l.b16 %v1570
    %v1710 = vunpack.c.h.b16 %v1570
    %v1711 = vunpack.c.l.b16 %v1571
    %v1712 = vunpack.c.h.b16 %v1571
    %v1713 = vunpack.c.l.b16 %v1572
    %v1714 = vunpack.c.h.b16 %v1572
    %v1715 = vunpack.c.l.b16 %v1573
    %v1716 = vunpack.c.h.b16 %v1573
    %v1717 = vunpack.c.l.b16 %v1574
    %v1718 = vunpack.c.h.b16 %v1574
    %v1719 = vunpack.c.l.b16 %v1575
    %v1720 = vunpack.c.h.b16 %v1575
    %v1721 = vunpack.c.l.b16 %v1576
    %v1722 = vunpack.c.h.b16 %v1576
    %v1723 = vunpack.c.l.b16 %v1577
    %v1724 = vunpack.c.h.b16 %v1577
    %v1725 = vunpack.c.l.b16 %v1578
    %v1726 = vunpack.c.h.b16 %v1578
    %v1727 = vunpack.c.l.b16 %v1579
    %v1728 = vunpack.c.h.b16 %v1579
    %v1729 = vunpack.c.l.b16 %v1580
    %v1730 = vunpack.c.h.b16 %v1580
    %v1731 = vunpack.c.l.b16 %v1581
    %v1732 = vunpack.c.h.b16 %v1581
    %v1733 = vunpack.c.l.b16 %v1582
    %v1734 = vunpack.c.h.b16 %v1582
    %v1735 = vunpack.c.l.b16 %v1583
    %v1736 = vunpack.c.h.b16 %v1583
    %v1737 = vunpack.c.l.b16 %v1584
    %v1738 = vunpack.c.h.b16 %v1584
    %v1739 = vunpack.c.l.b16 %v1585
    %v1740 = vunpack.c.h.b16 %v1585
    %v1741 = vunpack.c.l.b16 %v1586
    %v1742 = vunpack.c.h.b16 %v1586
    %v1743 = vunpack.c.l.b16 %v1587
    %v1744 = vunpack.c.h.b16 %v1587
    %v1745 = vunpack.c.l.b16 %v1588
    %v1746 = vunpack.c.h.b16 %v1588
    %v1747 = vunpack.c.l.b16 %v1589
    %v1748 = vunpack.c.h.b16 %v1589
    %v1749 = vunpack.c.l.b16 %v1590
    %v1750 = vunpack.c.h.b16 %v1590
    %v1751 = vunpack.c.l.b16 %v1591
    %v1752 = vunpack.c.h.b16 %v1591
    %v1753 = vunpack.c.l.b16 %v1592
    %v1754 = vunpack.c.h.b16 %v1592
    %v1755 = vunpack.c.l.b16 %v1593
    %v1756 = vunpack.c.h.b16 %v1593
    %v1757 = vunpack.c.l.b16 %v1594
    %v1758 = vunpack.c.h.b16 %v1594
    %v1759 = vunpack.c.l.b16 %v1595
    %v1760 = vunpack.c.h.b16 %v1595
    %v1761 = vunpack.c.l.b16 %v1596
    %v1762 = vunpack.c.h.b16 %v1596
    %v1763 = vunpack.c.l.b16 %v1597
    %v1764 = vunpack.c.h.b16 %v1597
    %v1765 = vunpack.c.l.b16 %v1598
    %v1766 = vunpack.c.h.b16 %v1598
    %v1767 = vunpack.c.l.b16 %v1599
    %v1768 = vunpack.c.h.b16 %v1599
    %v1769 = vunpack.c.l.b16 %v1600
    %v1770 = vunpack.c.h.b16 %v1600
    %v1771 = vunpack.c.l.b16 %v1601
    %v1772 = vunpack.c.h.b16 %v1601
    %v1773 = vunpack.c.l.b16 %v1602
    %v1774 = vunpack.c.h.b16 %v1602
    %v1775 = vunpack.c.l.b16 %v1603
    %v1776 = vunpack.c.h.b16 %v1603
    %v1777 = vunpack.c.l.b16 %v1604
    %v1778 = vunpack.c.h.b16 %v1604
    %v1779 = vunpack.c.l.b16 %v1605
    %v1780 = vunpack.c.h.b16 %v1605
    %v1781 = vunpack.c.l.b16 %v1606
    %v1782 = vunpack.c.h.b16 %v1606
    %v1783 = vunpack.c.l.b16 %v1607
    %v1784 = vunpack.c.h.b16 %v1607
    %v1785 = vunpack.c.l.b16 %v1608
    %v1786 = vunpack.c.h.b16 %v1608
    %v1787 = vunpack.c.l.b16 %v1609
    %v1788 = vunpack.c.h.b16 %v1609
    %v1789 = vunpack.c.l.b16 %v1610
    %v1790 = vunpack.c.h.b16 %v1610
    %v1791 = vunpack.c.l.b16 %v1611
    %v1792 = vunpack.c.h.b16 %v1611
    %v1793 = vunpack.c.l.b16 %v1612
    %v1794 = vunpack.c.h.b16 %v1612
    %v1795 = vunpack.c.l.b16 %v1613
    %v1796 = vunpack.c.h.b16 %v1613
    %v1797 = vunpack.c.l.b16 %v1614
    %v1798 = vunpack.c.h.b16 %v1614
    %v1799 = vunpack.c.l.b16 %v1615
    %v1800 = vunpack.c.h.b16 %v1615
    %v1801 = vunpack.c.l.b16 %v1616
    %v1802 = vunpack.c.h.b16 %v1616
    %v1803 = vunpack.c.l.b16 %v1617
    %v1804 = vunpack.c.h.b16 %v1617
    %v1805 = vunpack.c.l.b16 %v1618
    %v1806 = vunpack.c.h.b16 %v1618
    %v1807 = vunpack.c.l.b16 %v1619
    %v1808 = vunpack.c.h.b16 %v1619
    %v1809 = vunpack.c.l.b16 %v1620
    %v1810 = vunpack.c.h.b16 %v1620
    %v1811 = vunpack.c.l.b16 %v1621
    %v1812 = vunpack.c.h.b16 %v1621
    %v1813 = vunpack.c.l.b16 %v1622
    %v1814 = vunpack.c.h.b16 %v1622
    %v1815 = vpack.c.b16 %v1689, %v1687
    %v1816 = vpack.c.b16 %v1690, %v1688
    %v1817 = vpack.c.b16 %v1693, %v1691
    %v1818 = vpack.c.b16 %v1694, %v1692
    %v1819 = vpack.c.b16 %v1697, %v1695
    %v1820 = vpack.c.b16 %v1698, %v1696
    %v1821 = vpack.c.b16 %v1701, %v1699
    %v1822 = vpack.c.b16 %v1702, %v1700
    %v1823 = vpack.c.b16 %v1705, %v1703
    %v1824 = vpack.c.b16 %v1706, %v1704
    %v1825 = vpack.c.b16 %v1709, %v1707
    %v1826 = vpack.c.b16 %v1710, %v1708
    %v1827 = vpack.c.b16 %v1713, %v1711
    %v1828 = vpack.c.b16 %v1714, %v1712
    %v1829 = vpack.c.b16 %v1717, %v1715
    %v1830 = vpack.c.b16 %v1718, %v1716
    %v1831 = vpack.c.b16 %v1721, %v1719
    %v1832 = vpack.c.b16 %v1722, %v1720
    %v1833 = vpack.c.b16 %v1725, %v1723
    %v1834 = vpack.c.b16 %v1726, %v1724
    %v1835 = vpack.c.b16 %v1729, %v1727
    %v1836 = vpack.c.b16 %v1730, %v1728
    %v1837 = vpack.c.b16 %v1733, %v1731
    %v1838 = vpack.c.b16 %v1734, %v1732
    %v1839 = vpack.c.b16 %v1737, %v1735
    %v1840 = vpack.c.b16 %v1738, %v1736
    %v1841 = vpack.c.b16 %v1741, %v1739
    %v1842 = vpack.c.b16 %v1742, %v1740
    %v1843 = vpack.c.b16 %v1745, %v1743
    %v1844 = vpack.c.b16 %v1746, %v1744
    %v1845 = vpack.c.b16 %v1749, %v1747
    %v1846 = vpack.c.b16 %v1750, %v1748
    %v1847 = vpack.c.b16 %v1753, %v1751
    %v1848 = vpack.c.b16 %v1754, %v1752
    %v1849 = vpack.c.b16 %v1757, %v1755
    %v1850 = vpack.c.b16 %v1758, %v1756
    %v1851 = vpack.c.b16 %v1761, %v1759
    %v1852 = vpack.c.b16 %v1762, %v1760
    %v1853 = vpack.c.b16 %v1765, %v1763
    %v1854 = vpack.c.b16 %v1766, %v1764
    %v1855 = vpack.c.b16 %v1769, %v1767
    %v1856 = vpack.c.b16 %v1770, %v1768
    %v1857 = vpack.c.b16 %v1773, %v1771
    %v1858 = vpack.c.b16 %v1774, %v1772
    %v1859 = vpack.c.b16 %v1777, %v1775
    %v1860 = vpack.c.b16 %v1778, %v1776
    %v1861 = vpack.c.b16 %v1781, %v1779
    %v1862 = vpack.c.b16 %v1782, %v1780
    %v1863 = vpack.c.b16 %v1785, %v1783
    %v1864 = vpack.c.b16 %v1786, %v1784
    %v1865 = vpack.c.b16 %v1789, %v1787
    %v1866 = vpack.c.b16 %v1790, %v1788
    %v1867 = vpack.c.b16 %v1793, %v1791
    %v1868 = vpack.c.b16 %v1794, %v1792
    %v1869 = vpack.c.b16 %v1797, %v1795
    %v1870 = vpack.c.b16 %v1798, %v1796
    %v1871 = vpack.c.b16 %v1801, %v1799
    %v1872 = vpack.c.b16 %v1802, %v1800
    %v1873 = vpack.c.b16 %v1805, %v1803
    %v1874 = vpack.c.b16 %v1806, %v1804
    %v1875 = vpack.c.b16 %v1809, %v1807
    %v1876 = vpack.c.b16 %v1810, %v1808
    %v1877 = vpack.c.b16 %v1813, %v1811
    %v1878 = vpack.c.b16 %v1814, %v1812
    %1943 = vmatpush.bf16.msra.mxu0 %v1829
    %1944 = vmatpush.bf16.msra.mxu0 %v1827
    %1945 = vmatpush.bf16.msra.mxu0 %v1825
    %1946 = vmatpush.bf16.msra.mxu0 %v1823
    %1947 = vmatpush.bf16.msra.mxu0 %v1821
    %1948 = vmatpush.bf16.msra.mxu0 %v1819
    %1949 = vmatpush.bf16.msra.mxu0 %v1817
    %1950 = vmatpush.bf16.msra.mxu0 %v1815
    %1951 = vmatmul.bf16.gmra.mxu0 %v1555
    %v1952 = vpop.f32.mrf.mxu0
    %v1953 = vadd.f32 0.0, %v1952
    %v1954 = vpop.f32.mrf.mxu0
    %1955 = vdwg.mxu0
    %1956 = vmatpush.bf16.msra.mxu0 %v1845
    %1957 = vmatpush.bf16.msra.mxu0 %v1843
    %1958 = vmatpush.bf16.msra.mxu0 %v1841
    %1959 = vmatpush.bf16.msra.mxu0 %v1839
    %1960 = vmatpush.bf16.msra.mxu0 %v1837
    %1961 = vmatpush.bf16.msra.mxu0 %v1835
    %1962 = vmatpush.bf16.msra.mxu0 %v1833
    %1963 = vmatpush.bf16.msra.mxu0 %v1831
    %1964 = vmatmul.bf16.gmra.mxu0 %v1556
    %v1965 = vpop.f32.mrf.mxu0
    %v1966 = vadd.f32 %v1953, %v1965
    %v1967 = vpop.f32.mrf.mxu0
    %1968 = vdwg.mxu0
    %1969 = vmatpush.bf16.msra.mxu0 %v1861
    %1970 = vmatpush.bf16.msra.mxu0 %v1859
    %1971 = vmatpush.bf16.msra.mxu0 %v1857
    %1972 = vmatpush.bf16.msra.mxu0 %v1855
    %1973 = vmatpush.bf16.msra.mxu0 %v1853
    %1974 = vmatpush.bf16.msra.mxu0 %v1851
    %1975 = vmatpush.bf16.msra.mxu0 %v1849
    %1976 = vmatpush.bf16.msra.mxu0 %v1847
    %1977 = vmatmul.bf16.gmra.mxu0 %v1557
    %v1978 = vpop.f32.mrf.mxu0
    %v1979 = vadd.f32 %v1966, %v1978
    %v1980 = vpop.f32.mrf.mxu0
    %1981 = vdwg.mxu0
    %1982 = vmatpush.bf16.msra.mxu0 %v1877
    %1983 = vmatpush.bf16.msra.mxu0 %v1875
    %1984 = vmatpush.bf16.msra.mxu0 %v1873
    %1985 = vmatpush.bf16.msra.mxu0 %v1871
    %1986 = vmatpush.bf16.msra.mxu0 %v1869
    %1987 = vmatpush.bf16.msra.mxu0 %v1867
    %1988 = vmatpush.bf16.msra.mxu0 %v1865
    %1989 = vmatpush.bf16.msra.mxu0 %v1863
    %1990 = vmatmul.bf16.gmra.mxu0 %v1558
    %v1991 = vpop.f32.mrf.mxu0
    %v1992 = vadd.f32 %v1979, %v1991
    %v1993 = vpop.f32.mrf.mxu0
    %1994 = vdwg.mxu0
    %1995 = vmatpush.bf16.msra.mxu0 %v1830
    %1996 = vmatpush.bf16.msra.mxu0 %v1828
    %1997 = vmatpush.bf16.msra.mxu0 %v1826
    %1998 = vmatpush.bf16.msra.mxu0 %v1824
    %1999 = vmatpush.bf16.msra.mxu0 %v1822
    %2000 = vmatpush.bf16.msra.mxu0 %v1820
    %2001 = vmatpush.bf16.msra.mxu0 %v1818
    %2002 = vmatpush.bf16.msra.mxu0 %v1816
    %2003 = vmatmul.bf16.gmra.mxu0 %v1555
    %v2004 = vpop.f32.mrf.mxu0
    %v2005 = vadd.f32 0.0, %v2004
    %v2006 = vpop.f32.mrf.mxu0
    %2007 = vdwg.mxu0
    %2008 = vmatpush.bf16.msra.mxu0 %v1846
    %2009 = vmatpush.bf16.msra.mxu0 %v1844
    %2010 = vmatpush.bf16.msra.mxu0 %v1842
    %2011 = vmatpush.bf16.msra.mxu0 %v1840
    %2012 = vmatpush.bf16.msra.mxu0 %v1838
    %2013 = vmatpush.bf16.msra.mxu0 %v1836
    %2014 = vmatpush.bf16.msra.mxu0 %v1834
    %2015 = vmatpush.bf16.msra.mxu0 %v1832
    %2016 = vmatmul.bf16.gmra.mxu0 %v1556
    %v2017 = vpop.f32.mrf.mxu0
    %v2018 = vadd.f32 %v2005, %v2017
    %v2019 = vpop.f32.mrf.mxu0
    %2020 = vdwg.mxu0
    %2021 = vmatpush.bf16.msra.mxu0 %v1862
    %2022 = vmatpush.bf16.msra.mxu0 %v1860
    %2023 = vmatpush.bf16.msra.mxu0 %v1858
    %2024 = vmatpush.bf16.msra.mxu0 %v1856
    %2025 = vmatpush.bf16.msra.mxu0 %v1854
    %2026 = vmatpush.bf16.msra.mxu0 %v1852
    %2027 = vmatpush.bf16.msra.mxu0 %v1850
    %2028 = vmatpush.bf16.msra.mxu0 %v1848
    %2029 = vmatmul.bf16.gmra.mxu0 %v1557
    %v2030 = vpop.f32.mrf.mxu0
    %v2031 = vadd.f32 %v2018, %v2030
    %v2032 = vpop.f32.mrf.mxu0
    %2033 = vdwg.mxu0
    %2034 = vmatpush.bf16.msra.mxu0 %v1878
    %2035 = vmatpush.bf16.msra.mxu0 %v1876
    %2036 = vmatpush.bf16.msra.mxu0 %v1874
    %2037 = vmatpush.bf16.msra.mxu0 %v1872
    %2038 = vmatpush.bf16.msra.mxu0 %v1870
    %2039 = vmatpush.bf16.msra.mxu0 %v1868
    %2040 = vmatpush.bf16.msra.mxu0 %v1866
    %2041 = vmatpush.bf16.msra.mxu0 %v1864
    %2042 = vmatmul.bf16.gmra.mxu0 %v1558
    %v2043 = vpop.f32.mrf.mxu0
    %v2044 = vadd.f32 %v2031, %v2043
    %v2045 = vpop.f32.mrf.mxu0
    %2046 = vdwg.mxu0
    %v2047 = vld [vmem:[#allocation4] sm:$0xff]
    %v2048 = vld [vmem:[#allocation4 + $0x8] sm:$0xff]
    %v2049 = vld [vmem:[#allocation4 + $0x10] sm:$0xff]
    %v2050 = vld [vmem:[#allocation4 + $0x18] sm:$0xff]
    %v2051 = vld [vmem:[#allocation4 + $0x20] sm:$0xff]
    %v2052 = vld [vmem:[#allocation4 + $0x28] sm:$0xff]
    %v2053 = vld [vmem:[#allocation4 + $0x30] sm:$0xff]
    %v2054 = vld [vmem:[#allocation4 + $0x38] sm:$0xff]
    %v2055 = vld [vmem:[#allocation4 + $0x40] sm:$0xff]
    %v2056 = vld [vmem:[#allocation4 + $0x48] sm:$0xff]
    %v2057 = vld [vmem:[#allocation4 + $0x50] sm:$0xff]
    %v2058 = vld [vmem:[#allocation4 + $0x58] sm:$0xff]
    %v2059 = vld [vmem:[#allocation4 + $0x60] sm:$0xff]
    %v2060 = vld [vmem:[#allocation4 + $0x68] sm:$0xff]
    %v2061 = vld [vmem:[#allocation4 + $0x70] sm:$0xff]
    %v2062 = vld [vmem:[#allocation4 + $0x78] sm:$0xff]
    %v2063 = vld [vmem:[#allocation4 + $0x80] sm:$0xff]
    %v2064 = vld [vmem:[#allocation4 + $0x88] sm:$0xff]
    %v2065 = vld [vmem:[#allocation4 + $0x90] sm:$0xff]
    %v2066 = vld [vmem:[#allocation4 + $0x98] sm:$0xff]
    %v2067 = vld [vmem:[#allocation4 + $0xa0] sm:$0xff]
    %v2068 = vld [vmem:[#allocation4 + $0xa8] sm:$0xff]
    %v2069 = vld [vmem:[#allocation4 + $0xb0] sm:$0xff]
    %v2070 = vld [vmem:[#allocation4 + $0xb8] sm:$0xff]
    %v2071 = vld [vmem:[#allocation4 + $0xc0] sm:$0xff]
    %v2072 = vld [vmem:[#allocation4 + $0xc8] sm:$0xff]
    %v2073 = vld [vmem:[#allocation4 + $0xd0] sm:$0xff]
    %v2074 = vld [vmem:[#allocation4 + $0xd8] sm:$0xff]
    %v2075 = vld [vmem:[#allocation4 + $0xe0] sm:$0xff]
    %v2076 = vld [vmem:[#allocation4 + $0xe8] sm:$0xff]
    %v2077 = vld [vmem:[#allocation4 + $0xf0] sm:$0xff]
    %v2078 = vld [vmem:[#allocation4 + $0xf8] sm:$0xff]
    %2079 = vmatpush.msra.mxu0 %v2062
    %2080 = vmatpush.msra.mxu0 %v2061
    %2081 = vmatpush.msra.mxu0 %v2060
    %2082 = vmatpush.msra.mxu0 %v2059
    %2083 = vmatpush.msra.mxu0 %v2058
    %2084 = vmatpush.msra.mxu0 %v2057
    %2085 = vmatpush.msra.mxu0 %v2056
    %2086 = vmatpush.msra.mxu0 %v2055
    %2087 = vmatpush.msra.mxu0 %v2054
    %2088 = vmatpush.msra.mxu0 %v2053
    %2089 = vmatpush.msra.mxu0 %v2052
    %2090 = vmatpush.msra.mxu0 %v2051
    %2091 = vmatpush.msra.mxu0 %v2050
    %2092 = vmatpush.msra.mxu0 %v2049
    %2093 = vmatpush.msra.mxu0 %v2048
    %2094 = vmatpush.msra.mxu0 %v2047
    %2095 = vmatmul.f32.gmra.mxu0 %v1992
    %v2096 = vpop.f32.mrf.mxu0
    %v2097 = vadd.f32 0.0, %v2096
    %2098 = vdwg.mxu0
    %2099 = vmatpush.msra.mxu0 %v2078
    %2100 = vmatpush.msra.mxu0 %v2077
    %2101 = vmatpush.msra.mxu0 %v2076
    %2102 = vmatpush.msra.mxu0 %v2075
    %2103 = vmatpush.msra.mxu0 %v2074
    %2104 = vmatpush.msra.mxu0 %v2073
    %2105 = vmatpush.msra.mxu0 %v2072
    %2106 = vmatpush.msra.mxu0 %v2071
    %2107 = vmatpush.msra.mxu0 %v2070
    %2108 = vmatpush.msra.mxu0 %v2069
    %2109 = vmatpush.msra.mxu0 %v2068
    %2110 = vmatpush.msra.mxu0 %v2067
    %2111 = vmatpush.msra.mxu0 %v2066
    %2112 = vmatpush.msra.mxu0 %v2065
    %2113 = vmatpush.msra.mxu0 %v2064
    %2114 = vmatpush.msra.mxu0 %v2063
    %2115 = vmatmul.f32.gmra.mxu0 %v2044
    %v2116 = vpop.f32.mrf.mxu0
    %v2117 = vadd.f32 %v2097, %v2116
    %2118 = vdwg.mxu0
    %vm2119 = vcmask 123904
    %v2120 = vsel %vm2119, %v2117, 0.0
    %v2121 = vrot.slane %v2120, 4
    %v2122 = vadd.f32 %v2120, %v2121
    %v2123 = vrot.slane %v2122, 2
    %v2124 = vadd.f32 %v2122, %v2123
    %v2125 = vrot.slane %v2124, 1
    %v2126 = vadd.f32 %v2124, %v2125
    %v2127 = vmul.f32 %v2126, 0.03125
    %v2128 = vld [vmem:[%s6] sm:$0xff]
    %v2129 = vld [vmem:[%s6 + $0x8] sm:$0xff]
    %v2130 = vld [vmem:[%s6 + $0x10] sm:$0xff]
    %v2131 = vld [vmem:[%s6 + $0x18] sm:$0xff]
    %vm2132 = vcmask 130048
    %v2134 = vsel %vm2132, %v2127, 0
    %2136 = vmatpush.msra.mxu0 0.0
    %2137 = vmatpush.msra.mxu0 0.0
    %2138 = vmatpush.msra.mxu0 0.0
    %2139 = vmatpush.msra.mxu0 0.0
    %2140 = vmatpush.msra.mxu0 0.0
    %2141 = vmatpush.msra.mxu0 0.0
    %2142 = vmatpush.msra.mxu0 0.0
    %2143 = vmatpush.msra.mxu0 0.0
    %2144 = vmatpush.msra.mxu0 0.0
    %2145 = vmatpush.msra.mxu0 0.0
    %2146 = vmatpush.msra.mxu0 0.0
    %2147 = vmatpush.msra.mxu0 0.0
    %2148 = vmatpush.msra.mxu0 0.0
    %2149 = vmatpush.msra.mxu0 0.0
    %2150 = vmatpush.msra.mxu0 %v2130
    %2151 = vmatpush.msra.mxu0 %v2128
    %2152 = vmatmul.f32.gmra.mxu0 %v2134
    %v2153 = vpop.f32.mrf.mxu0
    %v2154 = vadd.f32 0.0, %v2153
    %2155 = vdwg.mxu0
    %2156 = vmatpush.msra.mxu0 0.0
    %2157 = vmatpush.msra.mxu0 0.0
    %2158 = vmatpush.msra.mxu0 0.0
    %2159 = vmatpush.msra.mxu0 0.0
    %2160 = vmatpush.msra.mxu0 0.0
    %2161 = vmatpush.msra.mxu0 0.0
    %2162 = vmatpush.msra.mxu0 0.0
    %2163 = vmatpush.msra.mxu0 0.0
    %2164 = vmatpush.msra.mxu0 0.0
    %2165 = vmatpush.msra.mxu0 0.0
    %2166 = vmatpush.msra.mxu0 0.0
    %2167 = vmatpush.msra.mxu0 0.0
    %2168 = vmatpush.msra.mxu0 0.0
    %2169 = vmatpush.msra.mxu0 0.0
    %2170 = vmatpush.msra.mxu0 %v2131
    %2171 = vmatpush.msra.mxu0 %v2129
    %2172 = vmatmul.f32.gmra.mxu0 %v2134
    %v2173 = vpop.f32.mrf.mxu0
    %v2174 = vadd.f32 0.0, %v2173
    %2175 = vdwg.mxu0
    %v2176 = vperm.slane %v2154, 0
    %v2177 = vperm.slane %v2174, 0
    %v2178 = vsub.f32 %v1992, %v2176
    %v2179 = vsub.f32 %v2044, %v2177
    %v2180 = vmul.f32 %v2178, %v2178
    %v2181 = vmul.f32 %v2179, %v2179
    %2182 = vmatpush.msra.mxu0 %v2062
    %2183 = vmatpush.msra.mxu0 %v2061
    %2184 = vmatpush.msra.mxu0 %v2060
    %2185 = vmatpush.msra.mxu0 %v2059
    %2186 = vmatpush.msra.mxu0 %v2058
    %2187 = vmatpush.msra.mxu0 %v2057
    %2188 = vmatpush.msra.mxu0 %v2056
    %2189 = vmatpush.msra.mxu0 %v2055
    %2190 = vmatpush.msra.mxu0 %v2054
    %2191 = vmatpush.msra.mxu0 %v2053
    %2192 = vmatpush.msra.mxu0 %v2052
    %2193 = vmatpush.msra.mxu0 %v2051
    %2194 = vmatpush.msra.mxu0 %v2050
    %2195 = vmatpush.msra.mxu0 %v2049
    %2196 = vmatpush.msra.mxu0 %v2048
    %2197 = vmatpush.msra.mxu0 %v2047
    %2198 = vmatmul.f32.gmra.mxu0 %v2180
    %v2199 = vpop.f32.mrf.mxu0
    %v2200 = vadd.f32 0.0, %v2199
    %2201 = vdwg.mxu0
    %2202 = vmatpush.msra.mxu0 %v2078
    %2203 = vmatpush.msra.mxu0 %v2077
    %2204 = vmatpush.msra.mxu0 %v2076
    %2205 = vmatpush.msra.mxu0 %v2075
    %2206 = vmatpush.msra.mxu0 %v2074
    %2207 = vmatpush.msra.mxu0 %v2073
    %2208 = vmatpush.msra.mxu0 %v2072
    %2209 = vmatpush.msra.mxu0 %v2071
    %2210 = vmatpush.msra.mxu0 %v2070
    %2211 = vmatpush.msra.mxu0 %v2069
    %2212 = vmatpush.msra.mxu0 %v2068
    %2213 = vmatpush.msra.mxu0 %v2067
    %2214 = vmatpush.msra.mxu0 %v2066
    %2215 = vmatpush.msra.mxu0 %v2065
    %2216 = vmatpush.msra.mxu0 %v2064
    %2217 = vmatpush.msra.mxu0 %v2063
    %2218 = vmatmul.f32.gmra.mxu0 %v2181
    %v2219 = vpop.f32.mrf.mxu0
    %v2220 = vadd.f32 %v2200, %v2219
    %2221 = vdwg.mxu0
    %v2222 = vsel %vm2119, %v2220, 0.0
    %v2223 = vrot.slane %v2222, 4
    %v2224 = vadd.f32 %v2222, %v2223
    %v2225 = vrot.slane %v2224, 2
    %v2226 = vadd.f32 %v2224, %v2225
    %v2227 = vrot.slane %v2226, 1
    %v2228 = vadd.f32 %v2226, %v2227
    %v2229 = vmul.f32 %v2228, 0.03125
    %v2230 = vld [vmem:[%s3] sm:$0x1]
    %v2231 = vadd.f32 %v2229, 1e-05
    %v2232 = vrsqrt.pop %v2231
    %v2233 = vmul.f32 %v2232, %v2231
    %v2234 = vmul.f32 %v2233, %v2232
    %v2235 = vmul.f32 0.5, %v2234
    %v2236 = vsub.f32 1.5, %v2235
    %v2237 = vmul.f32 %v2232, %v2236
    %vm2238 = vweird.f32 %v2231
    %vm2239 = vweird.f32 %v2232
    %vm2240 = vmor %vm2238, %vm2239
    %v2241 = vsel %vm2240, %v2232, %v2237
    %v2242 = vmul.f32 %v2230, %v2241
    %v2244 = vsel %vm2132, %v2242, 0
    %2246 = vmatpush.msra.mxu0 0.0
    %2247 = vmatpush.msra.mxu0 0.0
    %2248 = vmatpush.msra.mxu0 0.0
    %2249 = vmatpush.msra.mxu0 0.0
    %2250 = vmatpush.msra.mxu0 0.0
    %2251 = vmatpush.msra.mxu0 0.0
    %2252 = vmatpush.msra.mxu0 0.0
    %2253 = vmatpush.msra.mxu0 0.0
    %2254 = vmatpush.msra.mxu0 0.0
    %2255 = vmatpush.msra.mxu0 0.0
    %2256 = vmatpush.msra.mxu0 0.0
    %2257 = vmatpush.msra.mxu0 0.0
    %2258 = vmatpush.msra.mxu0 0.0
    %2259 = vmatpush.msra.mxu0 0.0
    %2260 = vmatpush.msra.mxu0 %v2130
    %2261 = vmatpush.msra.mxu0 %v2128
    %2262 = vmatmul.f32.gmra.mxu0 %v2244
    %v2263 = vpop.f32.mrf.mxu0
    %v2264 = vadd.f32 0.0, %v2263
    %2265 = vdwg.mxu0
    %2266 = vmatpush.msra.mxu0 0.0
    %2267 = vmatpush.msra.mxu0 0.0
    %2268 = vmatpush.msra.mxu0 0.0
    %2269 = vmatpush.msra.mxu0 0.0
    %2270 = vmatpush.msra.mxu0 0.0
    %2271 = vmatpush.msra.mxu0 0.0
    %2272 = vmatpush.msra.mxu0 0.0
    %2273 = vmatpush.msra.mxu0 0.0
    %2274 = vmatpush.msra.mxu0 0.0
    %2275 = vmatpush.msra.mxu0 0.0
    %2276 = vmatpush.msra.mxu0 0.0
    %2277 = vmatpush.msra.mxu0 0.0
    %2278 = vmatpush.msra.mxu0 0.0
    %2279 = vmatpush.msra.mxu0 0.0
    %2280 = vmatpush.msra.mxu0 %v2131
    %2281 = vmatpush.msra.mxu0 %v2129
    %2282 = vmatmul.f32.gmra.mxu0 %v2244
    %v2283 = vpop.f32.mrf.mxu0
    %v2284 = vadd.f32 0.0, %v2283
    %2285 = vdwg.mxu0
    %v2286 = vperm.slane %v2264, 0
    %v2287 = vperm.slane %v2284, 0
    %v2288 = vmul.f32 %v2178, %v2286
    %v2289 = vmul.f32 %v2179, %v2287
    %v2290 = vld [vmem:[%s4] sm:$0x1]
    %v2292 = vsel %vm2132, %v2290, 0
    %2294 = vmatpush.msra.mxu0 0.0
    %2295 = vmatpush.msra.mxu0 0.0
    %2296 = vmatpush.msra.mxu0 0.0
    %2297 = vmatpush.msra.mxu0 0.0
    %2298 = vmatpush.msra.mxu0 0.0
    %2299 = vmatpush.msra.mxu0 0.0
    %2300 = vmatpush.msra.mxu0 0.0
    %2301 = vmatpush.msra.mxu0 0.0
    %2302 = vmatpush.msra.mxu0 0.0
    %2303 = vmatpush.msra.mxu0 0.0
    %2304 = vmatpush.msra.mxu0 0.0
    %2305 = vmatpush.msra.mxu0 0.0
    %2306 = vmatpush.msra.mxu0 0.0
    %2307 = vmatpush.msra.mxu0 0.0
    %2308 = vmatpush.msra.mxu0 %v2130
    %2309 = vmatpush.msra.mxu0 %v2128
    %2310 = vmatmul.f32.gmra.mxu0 %v2292
    %v2311 = vpop.f32.mrf.mxu0
    %v2312 = vadd.f32 0.0, %v2311
    %2313 = vdwg.mxu0
    %2314 = vmatpush.msra.mxu0 0.0
    %2315 = vmatpush.msra.mxu0 0.0
    %2316 = vmatpush.msra.mxu0 0.0
    %2317 = vmatpush.msra.mxu0 0.0
    %2318 = vmatpush.msra.mxu0 0.0
    %2319 = vmatpush.msra.mxu0 0.0
    %2320 = vmatpush.msra.mxu0 0.0
    %2321 = vmatpush.msra.mxu0 0.0
    %2322 = vmatpush.msra.mxu0 0.0
    %2323 = vmatpush.msra.mxu0 0.0
    %2324 = vmatpush.msra.mxu0 0.0
    %2325 = vmatpush.msra.mxu0 0.0
    %2326 = vmatpush.msra.mxu0 0.0
    %2327 = vmatpush.msra.mxu0 0.0
    %2328 = vmatpush.msra.mxu0 %v2131
    %2329 = vmatpush.msra.mxu0 %v2129
    %2330 = vmatmul.f32.gmra.mxu0 %v2292
    %v2331 = vpop.f32.mrf.mxu0
    %v2332 = vadd.f32 0.0, %v2331
    %2333 = vdwg.mxu0
    %v2334 = vperm.slane %v2312, 0
    %v2335 = vperm.slane %v2332, 0
    %v2336 = vadd.f32 %v2288, %v2334
    %v2337 = vadd.f32 %v2289, %v2335
    %vm2338 = vcmp.ge.f32.partialorder %v2336, 0.0
    %vm2339 = vcmp.ge.f32.partialorder %v2337, 0.0
    %v2340 = vmul.f32 %v2336, 0.2
    %v2341 = vmul.f32 %v2337, 0.2
    %v2342 = vsel %vm2338, %v2336, %v2340
    %v2343 = vsel %vm2339, %v2337, %v2341
    %v2344 = vpack.c.bf16 %v2342, %v2342
    %v2345 = vpack.c.bf16 %v2343, %v2343
    %v2346 = vld [vmem:[%s7] sm:$0xf]
    %v2347 = vld [vmem:[%s7 + $0x4] sm:$0xf]
    %v2348 = vld [vmem:[%s7 + $0x8] sm:$0xf]
    %v2349 = vld [vmem:[%s7 + $0xc] sm:$0xf]
    %v2350 = vld [vmem:[%s7 + $0x10] sm:$0xf]
    %v2351 = vld [vmem:[%s7 + $0x14] sm:$0xf]
    %v2352 = vld [vmem:[%s7 + $0x18] sm:$0xf]
    %v2353 = vld [vmem:[%s7 + $0x1c] sm:$0xf]
    %v2354 = vld [vmem:[%s7 + $0x20] sm:$0xf]
    %v2355 = vld [vmem:[%s7 + $0x24] sm:$0xf]
    %v2356 = vld [vmem:[%s7 + $0x28] sm:$0xf]
    %v2357 = vld [vmem:[%s7 + $0x2c] sm:$0xf]
    %v2358 = vld [vmem:[%s7 + $0x30] sm:$0xf]
    %v2359 = vld [vmem:[%s7 + $0x34] sm:$0xf]
    %v2360 = vld [vmem:[%s7 + $0x38] sm:$0xf]
    %v2361 = vld [vmem:[%s7 + $0x3c] sm:$0xf]
    %v2362 = vld [vmem:[%s7 + $0x40] sm:$0xf]
    %v2363 = vld [vmem:[%s7 + $0x44] sm:$0xf]
    %v2364 = vld [vmem:[%s7 + $0x48] sm:$0xf]
    %v2365 = vld [vmem:[%s7 + $0x4c] sm:$0xf]
    %v2366 = vld [vmem:[%s7 + $0x50] sm:$0xf]
    %v2367 = vld [vmem:[%s7 + $0x54] sm:$0xf]
    %v2368 = vld [vmem:[%s7 + $0x58] sm:$0xf]
    %v2369 = vld [vmem:[%s7 + $0x5c] sm:$0xf]
    %v2370 = vld [vmem:[%s7 + $0x60] sm:$0xf]
    %v2371 = vld [vmem:[%s7 + $0x64] sm:$0xf]
    %v2372 = vld [vmem:[%s7 + $0x68] sm:$0xf]
    %v2373 = vld [vmem:[%s7 + $0x6c] sm:$0xf]
    %v2374 = vld [vmem:[%s7 + $0x70] sm:$0xf]
    %v2375 = vld [vmem:[%s7 + $0x74] sm:$0xf]
    %v2376 = vld [vmem:[%s7 + $0x78] sm:$0xf]
    %v2377 = vld [vmem:[%s7 + $0x7c] sm:$0xf]
    %v2378 = vld [vmem:[%s8] sm:$0x1]
    %v2380 = vperm.slane %v2378, 0
    %v2414 = vunpack.c.l.b16 %v2346
    %v2415 = vunpack.c.l.b16 %v2347
    %v2416 = vunpack.c.l.b16 %v2348
    %v2417 = vunpack.c.l.b16 %v2349
    %v2418 = vunpack.c.l.b16 %v2350
    %v2419 = vunpack.c.l.b16 %v2351
    %v2420 = vunpack.c.l.b16 %v2352
    %v2421 = vunpack.c.l.b16 %v2353
    %v2422 = vunpack.c.l.b16 %v2354
    %v2423 = vunpack.c.l.b16 %v2355
    %v2424 = vunpack.c.l.b16 %v2356
    %v2425 = vunpack.c.l.b16 %v2357
    %v2426 = vunpack.c.l.b16 %v2358
    %v2427 = vunpack.c.l.b16 %v2359
    %v2428 = vunpack.c.l.b16 %v2360
    %v2429 = vunpack.c.l.b16 %v2361
    %v2430 = vunpack.c.l.b16 %v2362
    %v2431 = vunpack.c.l.b16 %v2363
    %v2432 = vunpack.c.l.b16 %v2364
    %v2433 = vunpack.c.l.b16 %v2365
    %v2434 = vunpack.c.l.b16 %v2366
    %v2435 = vunpack.c.l.b16 %v2367
    %v2436 = vunpack.c.l.b16 %v2368
    %v2437 = vunpack.c.l.b16 %v2369
    %v2438 = vunpack.c.l.b16 %v2370
    %v2439 = vunpack.c.l.b16 %v2371
    %v2440 = vunpack.c.l.b16 %v2372
    %v2441 = vunpack.c.l.b16 %v2373
    %v2442 = vunpack.c.l.b16 %v2374
    %v2443 = vunpack.c.l.b16 %v2375
    %v2444 = vunpack.c.l.b16 %v2376
    %v2445 = vunpack.c.l.b16 %v2377
    %v2446 = vpack.c.b16 %v2415, %v2414
    %v2447 = vpack.c.b16 %v2417, %v2416
    %v2448 = vpack.c.b16 %v2419, %v2418
    %v2449 = vpack.c.b16 %v2421, %v2420
    %v2450 = vpack.c.b16 %v2423, %v2422
    %v2451 = vpack.c.b16 %v2425, %v2424
    %v2452 = vpack.c.b16 %v2427, %v2426
    %v2453 = vpack.c.b16 %v2429, %v2428
    %v2454 = vpack.c.b16 %v2431, %v2430
    %v2455 = vpack.c.b16 %v2433, %v2432
    %v2456 = vpack.c.b16 %v2435, %v2434
    %v2457 = vpack.c.b16 %v2437, %v2436
    %v2458 = vpack.c.b16 %v2439, %v2438
    %v2459 = vpack.c.b16 %v2441, %v2440
    %v2460 = vpack.c.b16 %v2443, %v2442
    %v2461 = vpack.c.b16 %v2445, %v2444
    %2478 = vmatpush.bf16.msra.mxu0 %v2453
    %2479 = vmatpush.bf16.msra.mxu0 %v2452
    %2480 = vmatpush.bf16.msra.mxu0 %v2451
    %2481 = vmatpush.bf16.msra.mxu0 %v2450
    %2482 = vmatpush.bf16.msra.mxu0 %v2449
    %2483 = vmatpush.bf16.msra.mxu0 %v2448
    %2484 = vmatpush.bf16.msra.mxu0 %v2447
    %2485 = vmatpush.bf16.msra.mxu0 %v2446
    %2486 = vmatmul.bf16.gmra.mxu0 %v2344
    %v2487 = vpop.f32.mrf.mxu0
    %v2488 = vadd.f32 %v2380, %v2487
    %v2489 = vpop.f32.mrf.mxu0
    %2490 = vdwg.mxu0
    %2491 = vmatpush.bf16.msra.mxu0 %v2461
    %2492 = vmatpush.bf16.msra.mxu0 %v2460
    %2493 = vmatpush.bf16.msra.mxu0 %v2459
    %2494 = vmatpush.bf16.msra.mxu0 %v2458
    %2495 = vmatpush.bf16.msra.mxu0 %v2457
    %2496 = vmatpush.bf16.msra.mxu0 %v2456
    %2497 = vmatpush.bf16.msra.mxu0 %v2455
    %2498 = vmatpush.bf16.msra.mxu0 %v2454
    %2499 = vmatmul.bf16.gmra.mxu0 %v2345
    %v2500 = vpop.f32.mrf.mxu0
    %v2501 = vadd.f32 %v2488, %v2500
    %v2502 = vpop.f32.mrf.mxu0
    %2503 = vdwg.mxu0
    %vm2504 = vcmask 254976
    %2505 = vst.msk [vmem:[%s9] sm:$0x3] %vm2504, %v2501
    // Predicated region
    $region46: #{forward.1} parent=1 // pred_check
      _
    $region47: #{forward.1} parent=1 // pred_check_branch
      %2507 = sbr.rel (0) target = $region49
    $region48: #{forward.1} parent=1 // pred_region
      _
    $region49: #{forward.1} parent=1 // pred_fallthru
      _
    // Predicated region
    $region50: #{forward.1} parent=1 // pred_check
      _
    $region51: #{forward.1} parent=1 // pred_check_branch
      %2509 = sbr.rel (0) target = $region53
    $region52: #{forward.1} parent=1 // pred_region
      _
    $region53: #{forward.1} parent=1 // pred_fallthru
      _
    %2510 = vsyncpa [#allocation3], 1
    %2511 = vsyncpa [#allocation5], 1

</llo_original>
